<compile_context>
chip_gen: v6e
topology: v6e:2x2x1
jax: 0.10.0
libtpu: 0.0.40
codegen_flags: <defaults>
</compile_context>

<pallas_src>
import math
from functools import partial

import jax
import jax.numpy as jnp
from jax import lax
from jax.experimental import pallas as pl
from jax.experimental.pallas import tpu as pltpu

EPS = 1e-5


# ----------------------------------------------------------------------------- tiling
def _pick_row_tile(M, bytes_per_row, vmem_budget=16 << 20, max_rows=4096):
    """Largest multiple-of-8 row tile that fits the (double-buffered) VMEM budget.

    Prefers a divisor of M so no padding is needed.  Budget is kept well under
    the v7x 64 MiB physical VMEM (and the 16 MiB v5e scoped default).
    """
    cap = min(max_rows, max(8, vmem_budget // max(bytes_per_row, 1)))
    cap = min(cap, ((M + 7) // 8) * 8)
    cap = max(8, (cap // 8) * 8)
    for t in range(cap, 7, -8):
        if M % t == 0:
            return t
    return cap  # caller pads rows up to a multiple of this


def _pad_rows(a, rows):
    return a if a.shape[0] == rows else jnp.pad(a, ((0, rows - a.shape[0]), (0, 0)))


# ----------------------------------------------------------------------------- kernels
def _conv1x1_stats_kernel(x_ref, w_ref, o_ref, sum_ref, sq_ref):
    # h = x @ w ; accumulate per-channel sum / sum-of-squares of h for BN stats.
    h = jnp.dot(x_ref[...], w_ref[...], preferred_element_type=jnp.float32)
    o_ref[...] = h

    @pl.when(pl.program_id(0) == 0)
    def _():
        sum_ref[...] = jnp.zeros_like(sum_ref)
        sq_ref[...] = jnp.zeros_like(sq_ref)

    sum_ref[...] += jnp.sum(h, axis=0, keepdims=True)
    sq_ref[...] += jnp.sum(h * h, axis=0, keepdims=True)


def _act_conv1x1_stats_only_kernel(x_ref, scale_ref, bias_ref, w_ref,
                                   sum_ref, sq_ref, *, valid_rows):
    # Stats of relu(x*scale+bias) @ w ; the conv output itself is NOT written
    # back to HBM (it is cheaply recomputed in pass D).
    a = jnp.maximum(x_ref[...] * scale_ref[...] + bias_ref[...], 0.0)
    if valid_rows is not None:  # zero padded tail rows so BN stats stay exact
        tm = x_ref.shape[0]
        row = pl.program_id(0) * tm + lax.broadcasted_iota(jnp.int32, a.shape, 0)
        a = jnp.where(row < valid_rows, a, 0.0)
    h = jnp.dot(a, w_ref[...], preferred_element_type=jnp.float32)

    @pl.when(pl.program_id(0) == 0)
    def _():
        sum_ref[...] = jnp.zeros_like(sum_ref)
        sq_ref[...] = jnp.zeros_like(sq_ref)

    sum_ref[...] += jnp.sum(h, axis=0, keepdims=True)
    sq_ref[...] += jnp.sum(h * h, axis=0, keepdims=True)


def _conv3x3x3_fused_kernel(scale_ref, bias_ref, z0_ref, z1_ref, z2_ref, w_ref,
                            o_ref, sum_ref, sq_ref):
    # z{0,1,2}_ref: three depth slices (d, d+1, d+2) of the D/H/W zero-padded
    # conv1 output, shape [Hp, Wp, C].  BN1 affine + ReLU is applied in-kernel;
    # pad positions are re-zeroed with masks.  The 27 taps are folded into the
    # matmul contraction dim -> ONE dot of shape [H*W, 27*C] x [27*C, C2].
    Hp, Wp, C = z0_ref.shape
    H, W = Hp - 2, Wp - 2
    d = pl.program_id(1)
    d_last = pl.num_programs(1) - 1

    scale = scale_ref[...].reshape(1, 1, C)
    bias = bias_ref[...].reshape(1, 1, C)

    hi = lax.broadcasted_iota(jnp.int32, (Hp, Wp), 0)
    wi = lax.broadcasted_iota(jnp.int32, (Hp, Wp), 1)
    interior = ((hi > 0) & (hi < Hp - 1) & (wi > 0) & (wi < Wp - 1))
    interior = interior.astype(jnp.float32)[:, :, None]

    def act(z_ref, depth_valid):
        a = jnp.maximum(z_ref[...] * scale + bias, 0.0)
        return a * (interior * depth_valid)

    a_slabs = (act(z0_ref, jnp.where(d == 0, 0.0, 1.0)),
               act(z1_ref, 1.0),
               act(z2_ref, jnp.where(d == d_last, 0.0, 1.0)))

    taps = []
    for a in a_slabs:                      # kd
        for kh in range(3):
            for kw in range(3):
                taps.append(a[kh:kh + H, kw:kw + W, :].reshape(H * W, C))
    patch = jnp.concatenate(taps, axis=1)  # [H*W, 27*C], (kd,kh,kw,ci) ordering
    h = jnp.dot(patch, w_ref[...], preferred_element_type=jnp.float32)
    o_ref[...] = h

    @pl.when((pl.program_id(0) == 0) & (d == 0))
    def _():
        sum_ref[...] = jnp.zeros_like(sum_ref)
        sq_ref[...] = jnp.zeros_like(sq_ref)

    sum_ref[...] += jnp.sum(h, axis=0, keepdims=True)
    sq_ref[...] += jnp.sum(h * h, axis=0, keepdims=True)


def _act_conv1x1_bn_add_relu_kernel(x_ref, s2_ref, b2_ref, w_ref,
                                    s3_ref, b3_ref, res_ref, o_ref):
    # relu( bn3( relu(bn2(x)) @ w ) + residual ), all fused in one tile.
    a = jnp.maximum(x_ref[...] * s2_ref[...] + b2_ref[...], 0.0)
    h = jnp.dot(a, w_ref[...], preferred_element_type=jnp.float32)
    y = h * s3_ref[...] + b3_ref[...] + res_ref[...]
    o_ref[...] = jnp.maximum(y, 0.0)


# ----------------------------------------------------------------------------- wrappers
def conv1x1_stats(x2d, w):
    M, Cin = x2d.shape
    Cout = w.shape[1]
    tm = _pick_row_tile(M, 8 * (Cin + Cout))
    Mp = pl.cdiv(M, tm) * tm
    xp = _pad_rows(x2d, Mp)  # zero rows contribute 0 to sum/sum-sq -> stats exact
    h, s, sq = pl.pallas_call(
        _conv1x1_stats_kernel,
        out_shape=(jax.ShapeDtypeStruct((Mp, Cout), jnp.float32),
                   jax.ShapeDtypeStruct((1, Cout), jnp.float32),
                   jax.ShapeDtypeStruct((1, Cout), jnp.float32)),
        grid=(Mp // tm,),
        in_specs=[pl.BlockSpec((tm, Cin), lambda i: (i, 0)),
                  pl.BlockSpec((Cin, Cout), lambda i: (0, 0))],
        out_specs=(pl.BlockSpec((tm, Cout), lambda i: (i, 0)),
                   pl.BlockSpec((1, Cout), lambda i: (0, 0)),
                   pl.BlockSpec((1, Cout), lambda i: (0, 0))),
        compiler_params=pltpu.CompilerParams(dimension_semantics=("arbitrary",)),
    )(xp, w)
    return h[:M], s[0], sq[0]


def act_conv1x1_stats_only(x2d, scale, bias, w):
    M, Cin = x2d.shape
    Cout = w.shape[1]
    tm = _pick_row_tile(M, 8 * Cin)
    Mp = pl.cdiv(M, tm) * tm
    xp = _pad_rows(x2d, Mp)
    scale2 = scale.reshape(1, Cin).astype(jnp.float32)
    bias2 = bias.reshape(1, Cin).astype(jnp.float32)
    kernel = partial(_act_conv1x1_stats_only_kernel,
                     valid_rows=None if Mp == M else M)
    s, sq = pl.pallas_call(
        kernel,
        out_shape=(jax.ShapeDtypeStruct((1, Cout), jnp.float32),
                   jax.ShapeDtypeStruct((1, Cout), jnp.float32)),
        grid=(Mp // tm,),
        in_specs=[pl.BlockSpec((tm, Cin), lambda i: (i, 0)),
                  pl.BlockSpec((1, Cin), lambda i: (0, 0)),
                  pl.BlockSpec((1, Cin), lambda i: (0, 0)),
                  pl.BlockSpec((Cin, Cout), lambda i: (0, 0))],
        out_specs=(pl.BlockSpec((1, Cout), lambda i: (0, 0)),
                   pl.BlockSpec((1, Cout), lambda i: (0, 0))),
        compiler_params=pltpu.CompilerParams(dimension_semantics=("arbitrary",)),
    )(xp, scale2, bias2, w)
    return s[0], sq[0]


def conv3x3x3_fused(h1_2d, scale, bias, w2_2d, N, D, H, W):
    C = h1_2d.shape[1]
    C2 = w2_2d.shape[1]
    Dp, Hp, Wp = D + 2, H + 2, W + 2
    M = N * D * H * W
    # Zero-pad D/H/W once (~(1+2/D)(1+2/H)(1+2/W)x, vs 27x for im2col).
    h1p = jnp.pad(h1_2d.reshape(N, D, H, W, C),
                  ((0, 0), (1, 1), (1, 1), (1, 1), (0, 0)))
    h1p = h1p.reshape(N * Dp, Hp, Wp, C)
    scale2 = scale.reshape(1, C).astype(jnp.float32)
    bias2 = bias.reshape(1, C).astype(jnp.float32)

    def slab_spec(kd):
        # halo'd depth slice d+kd of the padded activation slab for output depth d
        return pl.BlockSpec((None, Hp, Wp, C),
                            lambda n, d: (n * Dp + d + kd, 0, 0, 0))

    h2, s, sq = pl.pallas_call(
        _conv3x3x3_fused_kernel,
        out_shape=(jax.ShapeDtypeStruct((M, C2), jnp.float32),
                   jax.ShapeDtypeStruct((1, C2), jnp.float32),
                   jax.ShapeDtypeStruct((1, C2), jnp.float32)),
        grid=(N, D),
        in_specs=[pl.BlockSpec((1, C), lambda n, d: (0, 0)),
                  pl.BlockSpec((1, C), lambda n, d: (0, 0)),
                  slab_spec(0), slab_spec(1), slab_spec(2),
                  pl.BlockSpec((27 * C, C2), lambda n, d: (0, 0))],
        out_specs=(pl.BlockSpec((H * W, C2), lambda n, d: (n * D + d, 0)),
                   pl.BlockSpec((1, C2), lambda n, d: (0, 0)),
                   pl.BlockSpec((1, C2), lambda n, d: (0, 0))),
        compiler_params=pltpu.CompilerParams(
            dimension_semantics=("arbitrary", "arbitrary")),
    )(scale2, bias2, h1p, h1p, h1p, w2_2d)
    return h2, s[0], sq[0]


def act_conv1x1_bn_add_relu(h2_2d, scale2, bias2, w3, scale3, bias3, res2d):
    M, Cin = h2_2d.shape
    Cout = w3.shape[1]
    tm = _pick_row_tile(M, 8 * (Cin + 2 * Cout))
    Mp = pl.cdiv(M, tm) * tm
    hp, rp = _pad_rows(h2_2d, Mp), _pad_rows(res2d, Mp)
    s2 = scale2.reshape(1, Cin).astype(jnp.float32)
    b2 = bias2.reshape(1, Cin).astype(jnp.float32)
    s3 = scale3.reshape(1, Cout).astype(jnp.float32)
    b3 = bias3.reshape(1, Cout).astype(jnp.float32)
    row_in = pl.BlockSpec((tm, Cin), lambda i: (i, 0))
    row_out = pl.BlockSpec((tm, Cout), lambda i: (i, 0))
    chan_in = pl.BlockSpec((1, Cin), lambda i: (0, 0))
    chan_out = pl.BlockSpec((1, Cout), lambda i: (0, 0))
    out = pl.pallas_call(
        _act_conv1x1_bn_add_relu_kernel,
        out_shape=jax.ShapeDtypeStruct((Mp, Cout), jnp.float32),
        grid=(Mp // tm,),
        in_specs=[row_in, chan_in, chan_in,
                  pl.BlockSpec((Cin, Cout), lambda i: (0, 0)),
                  chan_out, chan_out, row_out],
        out_specs=row_out,
        compiler_params=pltpu.CompilerParams(dimension_semantics=("parallel",)),
    )(hp, s2, b2, w3, s3, b3, rp)
    return out[:M]


def _bn_affine(s, sq, gamma, beta, count, eps=EPS):
    # training-mode BN: batch mean, biased variance (tiny per-channel glue math)
    mean = s / count
    var = jnp.maximum(sq / count - mean * mean, 0.0)
    scale = gamma / jnp.sqrt(var + eps)
    bias = beta - mean * scale
    return scale, bias


# ----------------------------------------------------------------------------- bottleneck
def bottleneck_forward(x, params):
    """x: [N, D, H, W, Cin] channels-last; stride=1, downsample=None."""
    N, D, H, W, Cin = x.shape
    planes = params["w1"].shape[1]
    Cout = params["w3"].shape[1]
    assert Cin == Cout, "identity residual path requires in_planes == planes*expansion"
    M = N * D * H * W
    x2d = x.reshape(M, Cin).astype(jnp.float32)

    # stage 1: 1x1x1 conv (+ BN1 stats fused)
    h1, s1, q1 = conv1x1_stats(x2d, params["w1"].astype(jnp.float32))
    scale1, bias1 = _bn_affine(s1, q1, params["g1"], params["b1"], M)

    # stage 2: 3x3x3 conv with fused BN1+ReLU on its input (+ BN2 stats fused)
    w2_2d = params["w2"].reshape(27 * planes, planes).astype(jnp.float32)
    h2, s2, q2 = conv3x3x3_fused(h1, scale1, bias1, w2_2d, N, D, H, W)
    scale2, bias2 = _bn_affine(s2, q2, params["g2"], params["b2"], M)

    # stage 3a: BN3 statistics of conv3(relu(bn2(h2))) WITHOUT materializing h3
    w3 = params["w3"].astype(jnp.float32)
    s3, q3 = act_conv1x1_stats_only(h2, scale2, bias2, w3)
    scale3, bias3 = _bn_affine(s3, q3, params["g3"], params["b3"], M)

    # stage 3b: recompute the cheap 1x1x1 conv fused with BN3 + residual + ReLU
    out = act_conv1x1_bn_add_relu(h2, scale2, bias2, w3, scale3, bias3, x2d)
    return out.reshape(N, D, H, W, Cout)


# ----------------------------------------------------------------------------- reference
def _ref_bn(y, gamma, beta, eps=EPS):
    mean = jnp.mean(y, axis=(0, 1, 2, 3))
    var = jnp.mean((y - mean) ** 2, axis=(0, 1, 2, 3))
    return (y - mean) / jnp.sqrt(var + eps) * gamma + beta


def _ref_conv(x, w, padding):
    return lax.conv_general_dilated(
        x, w, window_strides=(1, 1, 1), padding=padding,
        dimension_numbers=("NDHWC", "DHWIO", "NDHWC"))


def reference_forward(x, p):
    Cin, planes = p["w1"].shape
    Cout = p["w3"].shape[1]
    h = _ref_conv(x, p["w1"].reshape(1, 1, 1, Cin, planes), "VALID")
    h = jax.nn.relu(_ref_bn(h, p["g1"], p["b1"]))
    h = _ref_conv(h, p["w2"].reshape(3, 3, 3, planes, planes), [(1, 1)] * 3)
    h = jax.nn.relu(_ref_bn(h, p["g2"], p["b2"]))
    h = _ref_conv(h, p["w3"].reshape(1, 1, 1, planes, Cout), "VALID")
    h = _ref_bn(h, p["g3"], p["b3"])
    return jax.nn.relu(h + x)


# ----------------------------------------------------------------------------- main
if __name__ == "__main__":
    N, D, H, W = 2, 8, 8, 8
    planes = 4
    expansion = 4
    in_planes = planes * expansion          # downsample=None => in_planes == planes*4
    out_planes = planes * expansion

    key = jax.random.PRNGKey(0)
    ks = jax.random.split(key, 10)

    params = {
        "w1": jax.random.normal(ks[0], (in_planes, planes), jnp.float32) / math.sqrt(in_planes),
        "w2": jax.random.normal(ks[1], (27, planes, planes), jnp.float32) / math.sqrt(27 * planes),
        "w3": jax.random.normal(ks[2], (planes, out_planes), jnp.float32) / math.sqrt(planes),
        "g1": 1.0 + 0.1 * jax.random.normal(ks[3], (planes,), jnp.float32),
        "b1": 0.1 * jax.random.normal(ks[4], (planes,), jnp.float32),
        "g2": 1.0 + 0.1 * jax.random.normal(ks[5], (planes,), jnp.float32),
        "b2": 0.1 * jax.random.normal(ks[6], (planes,), jnp.float32),
        "g3": 1.0 + 0.1 * jax.random.normal(ks[7], (out_planes,), jnp.float32),
        "b3": 0.1 * jax.random.normal(ks[8], (out_planes,), jnp.float32),
    }

    x = jax.random.normal(ks[9], (N, D, H, W, in_planes), jnp.float32)

    out = jax.block_until_ready(bottleneck_forward(x, params))
    ref = jax.block_until_ready(reference_forward(x, params))

    assert out.shape == (N, D, H, W, out_planes), out.shape
    assert jnp.allclose(out, ref, rtol=5e-3, atol=5e-3), \
        float(jnp.max(jnp.abs(out - ref)))

    print("KERNEL_OK")
</pallas_src>

<mosaic_0001>
module attributes {stable_mosaic.version = 11 : i64} {
  func.func @_conv1x1_stats_kernel(%arg0: i32, %arg1: memref<1024x16xf32, #tpu.memory_space<vmem>>, %arg2: memref<16x4xf32, #tpu.memory_space<vmem>>, %arg3: memref<1024x4xf32, #tpu.memory_space<vmem>>, %arg4: memref<1x4xf32, #tpu.memory_space<vmem>>, %arg5: memref<1x4xf32, #tpu.memory_space<vmem>>) attributes {dimension_semantics = [#tpu.dimension_semantics<arbitrary>], iteration_bounds = array<i64: 1>, scalar_prefetch = 0 : i64, scratch_operands = 0 : i64, tpu.core_type = #tpu.core_type<tc>, window_params = [{transform_indices = @transform_0, window_bounds = array<i64: 1024, 16>}, {pipeline_mode = #tpu.pipeline_mode<synchronous>, transform_indices = @transform_1, window_bounds = array<i64: 16, 4>}, {transform_indices = @transform_2, window_bounds = array<i64: 1024, 4>}, {pipeline_mode = #tpu.pipeline_mode<synchronous>, transform_indices = @transform_3, window_bounds = array<i64: 1, 4>}, {pipeline_mode = #tpu.pipeline_mode<synchronous>, transform_indices = @transform_4, window_bounds = array<i64: 1, 4>}]} {
    %c0 = arith.constant 0 : index
    %c0_0 = arith.constant 0 : index
    %0 = vector.load %arg1[%c0, %c0_0] : memref<1024x16xf32, #tpu.memory_space<vmem>>, vector<1024x16xf32>
    %c0_1 = arith.constant 0 : index
    %c0_2 = arith.constant 0 : index
    %1 = vector.load %arg2[%c0_1, %c0_2] : memref<16x4xf32, #tpu.memory_space<vmem>>, vector<16x4xf32>
    %cst = arith.constant dense<0.000000e+00> : vector<1024x4xf32>
    %2 = tpu.matmul %0, %1, %cst {dimension_numbers = #tpu.dot_dimension_numbers<[1], [0], [0], [1], [0, 0, 1, 1], [], []>} : vector<1024x16xf32>, vector<16x4xf32>, vector<1024x4xf32> -> vector<1024x4xf32>
    %c0_3 = arith.constant 0 : index
    %c0_4 = arith.constant 0 : index
    %3 = vector.load %arg3[%c0_3, %c0_4] : memref<1024x4xf32, #tpu.memory_space<vmem>>, vector<1024x4xf32>
    tpu.vector_store %arg3[%c0_3, %c0_4], %2 {strides = array<i32>} : memref<1024x4xf32, #tpu.memory_space<vmem>>, vector<1024x4xf32>,
    %c0_i32 = arith.constant 0 : i32
    %4 = arith.cmpi eq, %arg0, %c0_i32 : i32
    %5 = arith.extui %4 : i1 to i32
    %c0_i32_5 = arith.constant 0 : i32
    %6 = arith.cmpi ne, %5, %c0_i32_5 : i32
    scf.if %6 {
      %cst_16 = arith.constant 0.000000e+00 : f32
      %18 = vector.broadcast %cst_16 : f32 to vector<1x4xf32>
      %c0_17 = arith.constant 0 : index
      %c0_18 = arith.constant 0 : index
      %19 = vector.load %arg4[%c0_17, %c0_18] : memref<1x4xf32, #tpu.memory_space<vmem>>, vector<1x4xf32>
      tpu.vector_store %arg4[%c0_17, %c0_18], %18 {strides = array<i32>} : memref<1x4xf32, #tpu.memory_space<vmem>>, vector<1x4xf32>,
      %cst_19 = arith.constant 0.000000e+00 : f32
      %20 = vector.broadcast %cst_19 : f32 to vector<1x4xf32>
      %c0_20 = arith.constant 0 : index
      %c0_21 = arith.constant 0 : index
      %21 = vector.load %arg5[%c0_20, %c0_21] : memref<1x4xf32, #tpu.memory_space<vmem>>, vector<1x4xf32>
      tpu.vector_store %arg5[%c0_20, %c0_21], %20 {strides = array<i32>} : memref<1x4xf32, #tpu.memory_space<vmem>>, vector<1x4xf32>,
    } else {
    }
    %c0_6 = arith.constant 0 : index
    %c0_7 = arith.constant 0 : index
    %7 = vector.load %arg4[%c0_6, %c0_7] : memref<1x4xf32, #tpu.memory_space<vmem>>, vector<1x4xf32>
    %cst_8 = arith.constant dense<0.000000e+00> : vector<4xf32>
    %8 = vector.multi_reduction <add>, %2, %cst_8 [0] : vector<1024x4xf32> to vector<4xf32>
    %9 = vector.shape_cast %8 : vector<4xf32> to vector<1x4xf32>
    %10 = arith.addf %7, %9 : vector<1x4xf32>
    %c0_9 = arith.constant 0 : index
    %c0_10 = arith.constant 0 : index
    %11 = vector.load %arg4[%c0_9, %c0_10] : memref<1x4xf32, #tpu.memory_space<vmem>>, vector<1x4xf32>
    tpu.vector_store %arg4[%c0_9, %c0_10], %10 {strides = array<i32>} : memref<1x4xf32, #tpu.memory_space<vmem>>, vector<1x4xf32>,
    %c0_11 = arith.constant 0 : index
    %c0_12 = arith.constant 0 : index
    %12 = vector.load %arg5[%c0_11, %c0_12] : memref<1x4xf32, #tpu.memory_space<vmem>>, vector<1x4xf32>
    %13 = arith.mulf %2, %2 : vector<1024x4xf32>
    %cst_13 = arith.constant dense<0.000000e+00> : vector<4xf32>
    %14 = vector.multi_reduction <add>, %13, %cst_13 [0] : vector<1024x4xf32> to vector<4xf32>
    %15 = vector.shape_cast %14 : vector<4xf32> to vector<1x4xf32>
    %16 = arith.addf %12, %15 : vector<1x4xf32>
    %c0_14 = arith.constant 0 : index
    %c0_15 = arith.constant 0 : index
    %17 = vector.load %arg5[%c0_14, %c0_15] : memref<1x4xf32, #tpu.memory_space<vmem>>, vector<1x4xf32>
    tpu.vector_store %arg5[%c0_14, %c0_15], %16 {strides = array<i32>} : memref<1x4xf32, #tpu.memory_space<vmem>>, vector<1x4xf32>,
    return
  }
  func.func @transform_0(%arg0: i32) -> (i32, i32) {
    %c0_i32 = arith.constant 0 : i32
    %c0_i32_0 = arith.constant 0 : i32
    return %arg0, %c0_i32 : i32, i32
  }
  func.func @transform_1(%arg0: i32) -> (i32, i32) {
    %c0_i32 = arith.constant 0 : i32
    %c0_i32_0 = arith.constant 0 : i32
    %c0_i32_1 = arith.constant 0 : i32
    return %c0_i32, %c0_i32_0 : i32, i32
  }
  func.func @transform_2(%arg0: i32) -> (i32, i32) {
    %c0_i32 = arith.constant 0 : i32
    %c0_i32_0 = arith.constant 0 : i32
    return %arg0, %c0_i32 : i32, i32
  }
  func.func @transform_3(%arg0: i32) -> (i32, i32) {
    %c0_i32 = arith.constant 0 : i32
    %c0_i32_0 = arith.constant 0 : i32
    %c0_i32_1 = arith.constant 0 : i32
    return %c0_i32, %c0_i32_0 : i32, i32
  }
  func.func @transform_4(%arg0: i32) -> (i32, i32) {
    %c0_i32 = arith.constant 0 : i32
    %c0_i32_0 = arith.constant 0 : i32
    %c0_i32_1 = arith.constant 0 : i32
    return %c0_i32, %c0_i32_0 : i32, i32
  }
}

</mosaic_0001>

<llo_original>
// kernel: tpu_custom_call.1
$region0: #{tpu_custom_call.1}
  #allocation0 [shape = 'u32[]', space=smem, size = 0x4, offset = 0x4, fixed_abs, tag = 'smem constant byte address 0x4 - core index']
  #allocation1 [shape = 'u32[144,128]{1,0:T(1,128)}', space=vmem, size = 0x12000, scoped, tag = 'internal scratch']
  %s0 = inlined_call_operand.vmem [shape: f32[1024,16], index: 0, kind: input, shape index: {}]
  %s1 = inlined_call_operand.vmem [shape: f32[16,4], index: 1, kind: input, shape index: {}]
  %s2 = inlined_call_operand.vmem [shape: f32[1024,4], index: 2, kind: output, shape index: {0}]
  %s3 = inlined_call_operand.hbm [shape: f32[1,4], index: 3, kind: output, shape index: {1}]
  %s4 = inlined_call_operand.hbm [shape: f32[1,4], index: 4, kind: output, shape index: {2}]
  %5 = xla_tuple %s2, %s3, %s4
  %s6 = sld [smem:[#allocation0]]
  $region38: #{tpu_custom_call.1} parent=0
    _
  %s8 = ssub.s32 1, %s6
  %s9 = scalar_select 0, %s8, %s6
  $region1: #{tpu_custom_call.1} parent=0
    #allocation2 [shape = 'u8[512]{0}', space=vmem, size = 0x400, scoped, tag = 'output window, operand 1, single buffered']
    #allocation3 [shape = 's32[1]{0}', space=sflag, size = 0x4, scoped, tag = 'scoped memory for tpu_custom_call.1']
    #allocation4 [shape = 'u8[512]{0}', space=vmem, size = 0x400, scoped, tag = 'output window, operand 2, single buffered']
    #allocation5 [shape = 's32[1]{0}', space=sflag, size = 0x4, scoped, tag = 'scoped memory for tpu_custom_call.1']
    %10 = vsyncpa [#allocation3], 0
    %11 = vsyncpa [#allocation5], 0
    // Predicated region
    $region2: #{tpu_custom_call.1} parent=1 // pred_check
      _
    $region3: #{tpu_custom_call.1} parent=1 // pred_check_branch
      %13 = sbr.rel (0) target = $region5
    $region4: #{tpu_custom_call.1} parent=1 // pred_region
      _
    $region5: #{tpu_custom_call.1} parent=1 // pred_fallthru
      _
    // Predicated region
    $region6: #{tpu_custom_call.1} parent=1 // pred_check
      _
    $region7: #{tpu_custom_call.1} parent=1 // pred_check_branch
      %15 = sbr.rel (0) target = $region9
    $region8: #{tpu_custom_call.1} parent=1 // pred_region
      _
    $region9: #{tpu_custom_call.1} parent=1 // pred_fallthru
      _
    %v16 = vld [vmem:[%s0] sm:$0xff]
    %v17 = vld [vmem:[%s0 + $0x8] sm:$0xff]
    %v18 = vld [vmem:[%s0 + $0x10] sm:$0xff]
    %v19 = vld [vmem:[%s0 + $0x18] sm:$0xff]
    %v20 = vld [vmem:[%s0 + $0x20] sm:$0xff]
    %v21 = vld [vmem:[%s0 + $0x28] sm:$0xff]
    %v22 = vld [vmem:[%s0 + $0x30] sm:$0xff]
    %v23 = vld [vmem:[%s0 + $0x38] sm:$0xff]
    %v24 = vld [vmem:[%s0 + $0x40] sm:$0xff]
    %v25 = vld [vmem:[%s0 + $0x48] sm:$0xff]
    %v26 = vld [vmem:[%s0 + $0x50] sm:$0xff]
    %v27 = vld [vmem:[%s0 + $0x58] sm:$0xff]
    %v28 = vld [vmem:[%s0 + $0x60] sm:$0xff]
    %v29 = vld [vmem:[%s0 + $0x68] sm:$0xff]
    %v30 = vld [vmem:[%s0 + $0x70] sm:$0xff]
    %v31 = vld [vmem:[%s0 + $0x78] sm:$0xff]
    %v32 = vld [vmem:[%s0 + $0x80] sm:$0xff]
    %v33 = vld [vmem:[%s0 + $0x88] sm:$0xff]
    %v34 = vld [vmem:[%s0 + $0x90] sm:$0xff]
    %v35 = vld [vmem:[%s0 + $0x98] sm:$0xff]
    %v36 = vld [vmem:[%s0 + $0xa0] sm:$0xff]
    %v37 = vld [vmem:[%s0 + $0xa8] sm:$0xff]
    %v38 = vld [vmem:[%s0 + $0xb0] sm:$0xff]
    %v39 = vld [vmem:[%s0 + $0xb8] sm:$0xff]
    %v40 = vld [vmem:[%s0 + $0xc0] sm:$0xff]
    %v41 = vld [vmem:[%s0 + $0xc8] sm:$0xff]
    %v42 = vld [vmem:[%s0 + $0xd0] sm:$0xff]
    %v43 = vld [vmem:[%s0 + $0xd8] sm:$0xff]
    %v44 = vld [vmem:[%s0 + $0xe0] sm:$0xff]
    %v45 = vld [vmem:[%s0 + $0xe8] sm:$0xff]
    %v46 = vld [vmem:[%s0 + $0xf0] sm:$0xff]
    %v47 = vld [vmem:[%s0 + $0xf8] sm:$0xff]
    %v48 = vld [vmem:[%s0 + $0x100] sm:$0xff]
    %v49 = vld [vmem:[%s0 + $0x108] sm:$0xff]
    %v50 = vld [vmem:[%s0 + $0x110] sm:$0xff]
    %v51 = vld [vmem:[%s0 + $0x118] sm:$0xff]
    %v52 = vld [vmem:[%s0 + $0x120] sm:$0xff]
    %v53 = vld [vmem:[%s0 + $0x128] sm:$0xff]
    %v54 = vld [vmem:[%s0 + $0x130] sm:$0xff]
    %v55 = vld [vmem:[%s0 + $0x138] sm:$0xff]
    %v56 = vld [vmem:[%s0 + $0x140] sm:$0xff]
    %v57 = vld [vmem:[%s0 + $0x148] sm:$0xff]
    %v58 = vld [vmem:[%s0 + $0x150] sm:$0xff]
    %v59 = vld [vmem:[%s0 + $0x158] sm:$0xff]
    %v60 = vld [vmem:[%s0 + $0x160] sm:$0xff]
    %v61 = vld [vmem:[%s0 + $0x168] sm:$0xff]
    %v62 = vld [vmem:[%s0 + $0x170] sm:$0xff]
    %v63 = vld [vmem:[%s0 + $0x178] sm:$0xff]
    %v64 = vld [vmem:[%s0 + $0x180] sm:$0xff]
    %v65 = vld [vmem:[%s0 + $0x188] sm:$0xff]
    %v66 = vld [vmem:[%s0 + $0x190] sm:$0xff]
    %v67 = vld [vmem:[%s0 + $0x198] sm:$0xff]
    %v68 = vld [vmem:[%s0 + $0x1a0] sm:$0xff]
    %v69 = vld [vmem:[%s0 + $0x1a8] sm:$0xff]
    %v70 = vld [vmem:[%s0 + $0x1b0] sm:$0xff]
    %v71 = vld [vmem:[%s0 + $0x1b8] sm:$0xff]
    %v72 = vld [vmem:[%s0 + $0x1c0] sm:$0xff]
    %v73 = vld [vmem:[%s0 + $0x1c8] sm:$0xff]
    %v74 = vld [vmem:[%s0 + $0x1d0] sm:$0xff]
    %v75 = vld [vmem:[%s0 + $0x1d8] sm:$0xff]
    %v76 = vld [vmem:[%s0 + $0x1e0] sm:$0xff]
    %v77 = vld [vmem:[%s0 + $0x1e8] sm:$0xff]
    %v78 = vld [vmem:[%s0 + $0x1f0] sm:$0xff]
    %v79 = vld [vmem:[%s0 + $0x1f8] sm:$0xff]
    %v80 = vld [vmem:[%s0 + $0x200] sm:$0xff]
    %v81 = vld [vmem:[%s0 + $0x208] sm:$0xff]
    %v82 = vld [vmem:[%s0 + $0x210] sm:$0xff]
    %v83 = vld [vmem:[%s0 + $0x218] sm:$0xff]
    %v84 = vld [vmem:[%s0 + $0x220] sm:$0xff]
    %v85 = vld [vmem:[%s0 + $0x228] sm:$0xff]
    %v86 = vld [vmem:[%s0 + $0x230] sm:$0xff]
    %v87 = vld [vmem:[%s0 + $0x238] sm:$0xff]
    %v88 = vld [vmem:[%s0 + $0x240] sm:$0xff]
    %v89 = vld [vmem:[%s0 + $0x248] sm:$0xff]
    %v90 = vld [vmem:[%s0 + $0x250] sm:$0xff]
    %v91 = vld [vmem:[%s0 + $0x258] sm:$0xff]
    %v92 = vld [vmem:[%s0 + $0x260] sm:$0xff]
    %v93 = vld [vmem:[%s0 + $0x268] sm:$0xff]
    %v94 = vld [vmem:[%s0 + $0x270] sm:$0xff]
    %v95 = vld [vmem:[%s0 + $0x278] sm:$0xff]
    %v96 = vld [vmem:[%s0 + $0x280] sm:$0xff]
    %v97 = vld [vmem:[%s0 + $0x288] sm:$0xff]
    %v98 = vld [vmem:[%s0 + $0x290] sm:$0xff]
    %v99 = vld [vmem:[%s0 + $0x298] sm:$0xff]
    %v100 = vld [vmem:[%s0 + $0x2a0] sm:$0xff]
    %v101 = vld [vmem:[%s0 + $0x2a8] sm:$0xff]
    %v102 = vld [vmem:[%s0 + $0x2b0] sm:$0xff]
    %v103 = vld [vmem:[%s0 + $0x2b8] sm:$0xff]
    %v104 = vld [vmem:[%s0 + $0x2c0] sm:$0xff]
    %v105 = vld [vmem:[%s0 + $0x2c8] sm:$0xff]
    %v106 = vld [vmem:[%s0 + $0x2d0] sm:$0xff]
    %v107 = vld [vmem:[%s0 + $0x2d8] sm:$0xff]
    %v108 = vld [vmem:[%s0 + $0x2e0] sm:$0xff]
    %v109 = vld [vmem:[%s0 + $0x2e8] sm:$0xff]
    %v110 = vld [vmem:[%s0 + $0x2f0] sm:$0xff]
    %v111 = vld [vmem:[%s0 + $0x2f8] sm:$0xff]
    %v112 = vld [vmem:[%s0 + $0x300] sm:$0xff]
    %v113 = vld [vmem:[%s0 + $0x308] sm:$0xff]
    %v114 = vld [vmem:[%s0 + $0x310] sm:$0xff]
    %v115 = vld [vmem:[%s0 + $0x318] sm:$0xff]
    %v116 = vld [vmem:[%s0 + $0x320] sm:$0xff]
    %v117 = vld [vmem:[%s0 + $0x328] sm:$0xff]
    %v118 = vld [vmem:[%s0 + $0x330] sm:$0xff]
    %v119 = vld [vmem:[%s0 + $0x338] sm:$0xff]
    %v120 = vld [vmem:[%s0 + $0x340] sm:$0xff]
    %v121 = vld [vmem:[%s0 + $0x348] sm:$0xff]
    %v122 = vld [vmem:[%s0 + $0x350] sm:$0xff]
    %v123 = vld [vmem:[%s0 + $0x358] sm:$0xff]
    %v124 = vld [vmem:[%s0 + $0x360] sm:$0xff]
    %v125 = vld [vmem:[%s0 + $0x368] sm:$0xff]
    %v126 = vld [vmem:[%s0 + $0x370] sm:$0xff]
    %v127 = vld [vmem:[%s0 + $0x378] sm:$0xff]
    %v128 = vld [vmem:[%s0 + $0x380] sm:$0xff]
    %v129 = vld [vmem:[%s0 + $0x388] sm:$0xff]
    %v130 = vld [vmem:[%s0 + $0x390] sm:$0xff]
    %v131 = vld [vmem:[%s0 + $0x398] sm:$0xff]
    %v132 = vld [vmem:[%s0 + $0x3a0] sm:$0xff]
    %v133 = vld [vmem:[%s0 + $0x3a8] sm:$0xff]
    %v134 = vld [vmem:[%s0 + $0x3b0] sm:$0xff]
    %v135 = vld [vmem:[%s0 + $0x3b8] sm:$0xff]
    %v136 = vld [vmem:[%s0 + $0x3c0] sm:$0xff]
    %v137 = vld [vmem:[%s0 + $0x3c8] sm:$0xff]
    %v138 = vld [vmem:[%s0 + $0x3d0] sm:$0xff]
    %v139 = vld [vmem:[%s0 + $0x3d8] sm:$0xff]
    %v140 = vld [vmem:[%s0 + $0x3e0] sm:$0xff]
    %v141 = vld [vmem:[%s0 + $0x3e8] sm:$0xff]
    %v142 = vld [vmem:[%s0 + $0x3f0] sm:$0xff]
    %v143 = vld [vmem:[%s0 + $0x3f8] sm:$0xff]
    %v144 = vld [vmem:[%s1] sm:$0xff]
    %v145 = vld [vmem:[%s1 + $0x8] sm:$0xff]
    %vm146 = vcmask 130048
    %v148 = vsel %vm146, %v16, 0
    %v151 = vsel %vm146, %v17, 0
    %v154 = vsel %vm146, %v18, 0
    %v157 = vsel %vm146, %v19, 0
    %v160 = vsel %vm146, %v20, 0
    %v163 = vsel %vm146, %v21, 0
    %v166 = vsel %vm146, %v22, 0
    %v169 = vsel %vm146, %v23, 0
    %v172 = vsel %vm146, %v24, 0
    %v175 = vsel %vm146, %v25, 0
    %v178 = vsel %vm146, %v26, 0
    %v181 = vsel %vm146, %v27, 0
    %v184 = vsel %vm146, %v28, 0
    %v187 = vsel %vm146, %v29, 0
    %v190 = vsel %vm146, %v30, 0
    %v193 = vsel %vm146, %v31, 0
    %v196 = vsel %vm146, %v32, 0
    %v199 = vsel %vm146, %v33, 0
    %v202 = vsel %vm146, %v34, 0
    %v205 = vsel %vm146, %v35, 0
    %v208 = vsel %vm146, %v36, 0
    %v211 = vsel %vm146, %v37, 0
    %v214 = vsel %vm146, %v38, 0
    %v217 = vsel %vm146, %v39, 0
    %v220 = vsel %vm146, %v40, 0
    %v223 = vsel %vm146, %v41, 0
    %v226 = vsel %vm146, %v42, 0
    %v229 = vsel %vm146, %v43, 0
    %v232 = vsel %vm146, %v44, 0
    %v235 = vsel %vm146, %v45, 0
    %v238 = vsel %vm146, %v46, 0
    %v241 = vsel %vm146, %v47, 0
    %v244 = vsel %vm146, %v48, 0
    %v247 = vsel %vm146, %v49, 0
    %v250 = vsel %vm146, %v50, 0
    %v253 = vsel %vm146, %v51, 0
    %v256 = vsel %vm146, %v52, 0
    %v259 = vsel %vm146, %v53, 0
    %v262 = vsel %vm146, %v54, 0
    %v265 = vsel %vm146, %v55, 0
    %v268 = vsel %vm146, %v56, 0
    %v271 = vsel %vm146, %v57, 0
    %v274 = vsel %vm146, %v58, 0
    %v277 = vsel %vm146, %v59, 0
    %v280 = vsel %vm146, %v60, 0
    %v283 = vsel %vm146, %v61, 0
    %v286 = vsel %vm146, %v62, 0
    %v289 = vsel %vm146, %v63, 0
    %v292 = vsel %vm146, %v64, 0
    %v295 = vsel %vm146, %v65, 0
    %v298 = vsel %vm146, %v66, 0
    %v301 = vsel %vm146, %v67, 0
    %v304 = vsel %vm146, %v68, 0
    %v307 = vsel %vm146, %v69, 0
    %v310 = vsel %vm146, %v70, 0
    %v313 = vsel %vm146, %v71, 0
    %v316 = vsel %vm146, %v72, 0
    %v319 = vsel %vm146, %v73, 0
    %v322 = vsel %vm146, %v74, 0
    %v325 = vsel %vm146, %v75, 0
    %v328 = vsel %vm146, %v76, 0
    %v331 = vsel %vm146, %v77, 0
    %v334 = vsel %vm146, %v78, 0
    %v337 = vsel %vm146, %v79, 0
    %v340 = vsel %vm146, %v80, 0
    %v343 = vsel %vm146, %v81, 0
    %v346 = vsel %vm146, %v82, 0
    %v349 = vsel %vm146, %v83, 0
    %v352 = vsel %vm146, %v84, 0
    %v355 = vsel %vm146, %v85, 0
    %v358 = vsel %vm146, %v86, 0
    %v361 = vsel %vm146, %v87, 0
    %v364 = vsel %vm146, %v88, 0
    %v367 = vsel %vm146, %v89, 0
    %v370 = vsel %vm146, %v90, 0
    %v373 = vsel %vm146, %v91, 0
    %v376 = vsel %vm146, %v92, 0
    %v379 = vsel %vm146, %v93, 0
    %v382 = vsel %vm146, %v94, 0
    %v385 = vsel %vm146, %v95, 0
    %v388 = vsel %vm146, %v96, 0
    %v391 = vsel %vm146, %v97, 0
    %v394 = vsel %vm146, %v98, 0
    %v397 = vsel %vm146, %v99, 0
    %v400 = vsel %vm146, %v100, 0
    %v403 = vsel %vm146, %v101, 0
    %v406 = vsel %vm146, %v102, 0
    %v409 = vsel %vm146, %v103, 0
    %v412 = vsel %vm146, %v104, 0
    %v415 = vsel %vm146, %v105, 0
    %v418 = vsel %vm146, %v106, 0
    %v421 = vsel %vm146, %v107, 0
    %v424 = vsel %vm146, %v108, 0
    %v427 = vsel %vm146, %v109, 0
    %v430 = vsel %vm146, %v110, 0
    %v433 = vsel %vm146, %v111, 0
    %v436 = vsel %vm146, %v112, 0
    %v439 = vsel %vm146, %v113, 0
    %v442 = vsel %vm146, %v114, 0
    %v445 = vsel %vm146, %v115, 0
    %v448 = vsel %vm146, %v116, 0
    %v451 = vsel %vm146, %v117, 0
    %v454 = vsel %vm146, %v118, 0
    %v457 = vsel %vm146, %v119, 0
    %v460 = vsel %vm146, %v120, 0
    %v463 = vsel %vm146, %v121, 0
    %v466 = vsel %vm146, %v122, 0
    %v469 = vsel %vm146, %v123, 0
    %v472 = vsel %vm146, %v124, 0
    %v475 = vsel %vm146, %v125, 0
    %v478 = vsel %vm146, %v126, 0
    %v481 = vsel %vm146, %v127, 0
    %v484 = vsel %vm146, %v128, 0
    %v487 = vsel %vm146, %v129, 0
    %v490 = vsel %vm146, %v130, 0
    %v493 = vsel %vm146, %v131, 0
    %v496 = vsel %vm146, %v132, 0
    %v499 = vsel %vm146, %v133, 0
    %v502 = vsel %vm146, %v134, 0
    %v505 = vsel %vm146, %v135, 0
    %v508 = vsel %vm146, %v136, 0
    %v511 = vsel %vm146, %v137, 0
    %v514 = vsel %vm146, %v138, 0
    %v517 = vsel %vm146, %v139, 0
    %v520 = vsel %vm146, %v140, 0
    %v523 = vsel %vm146, %v141, 0
    %v526 = vsel %vm146, %v142, 0
    %v529 = vsel %vm146, %v143, 0
    %531 = vmatprep.subr.mxu0 0.0
    %532 = vmatpush1.msra.mxu0 0.0
    %533 = vmatprep.subr.mxu0 0.0
    %534 = vmatpush1.msra.mxu0 0.0
    %535 = vmatprep.subr.mxu0 0.0
    %536 = vmatpush1.msra.mxu0 0.0
    %537 = vmatprep.subr.mxu0 0.0
    %538 = vmatpush1.msra.mxu0 0.0
    %539 = vmatprep.subr.mxu0 0.0
    %540 = vmatpush1.msra.mxu0 0.0
    %541 = vmatprep.subr.mxu0 0.0
    %542 = vmatpush1.msra.mxu0 0.0
    %543 = vmatprep.subr.mxu0 0.0
    %544 = vmatpush1.msra.mxu0 0.0
    %545 = vmatprep.subr.mxu0 0.0
    %546 = vmatpush1.msra.mxu0 0.0
    %547 = vmatprep.subr.mxu0 0.0
    %548 = vmatpush1.msra.mxu0 0.0
    %549 = vmatprep.subr.mxu0 0.0
    %550 = vmatpush1.msra.mxu0 0.0
    %551 = vmatprep.subr.mxu0 0.0
    %552 = vmatpush1.msra.mxu0 0.0
    %553 = vmatprep.subr.mxu0 0.0
    %554 = vmatpush1.msra.mxu0 0.0
    %555 = vmatprep.subr.mxu0 0.0
    %556 = vmatpush1.msra.mxu0 0.0
    %557 = vmatprep.subr.mxu0 0.0
    %558 = vmatpush1.msra.mxu0 0.0
    %559 = vmatprep.subr.mxu0 0.0
    %560 = vmatpush1.msra.mxu0 %v145
    %561 = vmatprep.subr.mxu0 0.0
    %562 = vmatpush1.msra.mxu0 %v144
    %563 = vmatprep.subr.mxu0 0.0
    %564 = vmatpush2.msra.mxu0 0.0
    %565 = vmatprep.subr.mxu0 0.0
    %566 = vmatpush2.msra.mxu0 0.0
    %567 = vmatprep.subr.mxu0 0.0
    %568 = vmatpush2.msra.mxu0 0.0
    %569 = vmatprep.subr.mxu0 0.0
    %570 = vmatpush2.msra.mxu0 0.0
    %571 = vmatprep.subr.mxu0 0.0
    %572 = vmatpush2.msra.mxu0 0.0
    %573 = vmatprep.subr.mxu0 0.0
    %574 = vmatpush2.msra.mxu0 0.0
    %575 = vmatprep.subr.mxu0 0.0
    %576 = vmatpush2.msra.mxu0 0.0
    %577 = vmatprep.subr.mxu0 0.0
    %578 = vmatpush2.msra.mxu0 0.0
    %579 = vmatprep.subr.mxu0 0.0
    %580 = vmatpush2.msra.mxu0 0.0
    %581 = vmatprep.subr.mxu0 0.0
    %582 = vmatpush2.msra.mxu0 0.0
    %583 = vmatprep.subr.mxu0 0.0
    %584 = vmatpush2.msra.mxu0 0.0
    %585 = vmatprep.subr.mxu0 0.0
    %586 = vmatpush2.msra.mxu0 0.0
    %587 = vmatprep.subr.mxu0 0.0
    %588 = vmatpush2.msra.mxu0 0.0
    %589 = vmatprep.subr.mxu0 0.0
    %590 = vmatpush2.msra.mxu0 0.0
    %591 = vmatprep.subr.mxu0 0.0
    %592 = vmatpush2.msra.mxu0 0.0
    %593 = vmatprep.subr.mxu0 0.0
    %594 = vmatpush2.msra.mxu0 0.0
    %595 = vmatprep.mubr.f32.mxu0 0.0
    %596 = vmatmul.mubr.f32.gmra.mxu0 %v148
    %v597 = vpop.f32.mrf.mxu0
    %v598 = vadd.f32 0.0, %v597
    %v599 = vpop.f32.mrf.mxu0
    %600 = vmatprep.mubr.f32.mxu0 0.0
    %601 = vmatmul.mubr.f32.gmra.mxu0 %v151
    %v602 = vpop.f32.mrf.mxu0
    %v603 = vadd.f32 0.0, %v602
    %v604 = vpop.f32.mrf.mxu0
    %605 = vmatprep.mubr.f32.mxu0 0.0
    %606 = vmatmul.mubr.f32.gmra.mxu0 %v154
    %v607 = vpop.f32.mrf.mxu0
    %v608 = vadd.f32 0.0, %v607
    %v609 = vpop.f32.mrf.mxu0
    %610 = vmatprep.mubr.f32.mxu0 0.0
    %611 = vmatmul.mubr.f32.gmra.mxu0 %v157
    %v612 = vpop.f32.mrf.mxu0
    %v613 = vadd.f32 0.0, %v612
    %v614 = vpop.f32.mrf.mxu0
    %615 = vmatprep.mubr.f32.mxu0 0.0
    %616 = vmatmul.mubr.f32.gmra.mxu0 %v160
    %v617 = vpop.f32.mrf.mxu0
    %v618 = vadd.f32 0.0, %v617
    %v619 = vpop.f32.mrf.mxu0
    %620 = vmatprep.mubr.f32.mxu0 0.0
    %621 = vmatmul.mubr.f32.gmra.mxu0 %v163
    %v622 = vpop.f32.mrf.mxu0
    %v623 = vadd.f32 0.0, %v622
    %v624 = vpop.f32.mrf.mxu0
    %625 = vmatprep.mubr.f32.mxu0 0.0
    %626 = vmatmul.mubr.f32.gmra.mxu0 %v166
    %v627 = vpop.f32.mrf.mxu0
    %v628 = vadd.f32 0.0, %v627
    %v629 = vpop.f32.mrf.mxu0
    %630 = vmatprep.mubr.f32.mxu0 0.0
    %631 = vmatmul.mubr.f32.gmra.mxu0 %v169
    %v632 = vpop.f32.mrf.mxu0
    %v633 = vadd.f32 0.0, %v632
    %v634 = vpop.f32.mrf.mxu0
    %635 = vmatprep.mubr.f32.mxu0 0.0
    %636 = vmatmul.mubr.f32.gmra.mxu0 %v172
    %v637 = vpop.f32.mrf.mxu0
    %v638 = vadd.f32 0.0, %v637
    %v639 = vpop.f32.mrf.mxu0
    %640 = vmatprep.mubr.f32.mxu0 0.0
    %641 = vmatmul.mubr.f32.gmra.mxu0 %v175
    %v642 = vpop.f32.mrf.mxu0
    %v643 = vadd.f32 0.0, %v642
    %v644 = vpop.f32.mrf.mxu0
    %645 = vmatprep.mubr.f32.mxu0 0.0
    %646 = vmatmul.mubr.f32.gmra.mxu0 %v178
    %v647 = vpop.f32.mrf.mxu0
    %v648 = vadd.f32 0.0, %v647
    %v649 = vpop.f32.mrf.mxu0
    %650 = vmatprep.mubr.f32.mxu0 0.0
    %651 = vmatmul.mubr.f32.gmra.mxu0 %v181
    %v652 = vpop.f32.mrf.mxu0
    %v653 = vadd.f32 0.0, %v652
    %v654 = vpop.f32.mrf.mxu0
    %655 = vmatprep.mubr.f32.mxu0 0.0
    %656 = vmatmul.mubr.f32.gmra.mxu0 %v184
    %v657 = vpop.f32.mrf.mxu0
    %v658 = vadd.f32 0.0, %v657
    %v659 = vpop.f32.mrf.mxu0
    %660 = vmatprep.mubr.f32.mxu0 0.0
    %661 = vmatmul.mubr.f32.gmra.mxu0 %v187
    %v662 = vpop.f32.mrf.mxu0
    %v663 = vadd.f32 0.0, %v662
    %v664 = vpop.f32.mrf.mxu0
    %665 = vmatprep.mubr.f32.mxu0 0.0
    %666 = vmatmul.mubr.f32.gmra.mxu0 %v190
    %v667 = vpop.f32.mrf.mxu0
    %v668 = vadd.f32 0.0, %v667
    %v669 = vpop.f32.mrf.mxu0
    %670 = vmatprep.mubr.f32.mxu0 0.0
    %671 = vmatmul.mubr.f32.gmra.mxu0 %v193
    %v672 = vpop.f32.mrf.mxu0
    %v673 = vadd.f32 0.0, %v672
    %v674 = vpop.f32.mrf.mxu0
    %675 = vmatprep.mubr.f32.mxu0 0.0
    %676 = vmatmul.mubr.f32.gmra.mxu0 %v196
    %v677 = vpop.f32.mrf.mxu0
    %v678 = vadd.f32 0.0, %v677
    %v679 = vpop.f32.mrf.mxu0
    %680 = vmatprep.mubr.f32.mxu0 0.0
    %681 = vmatmul.mubr.f32.gmra.mxu0 %v199
    %v682 = vpop.f32.mrf.mxu0
    %v683 = vadd.f32 0.0, %v682
    %v684 = vpop.f32.mrf.mxu0
    %685 = vmatprep.mubr.f32.mxu0 0.0
    %686 = vmatmul.mubr.f32.gmra.mxu0 %v202
    %v687 = vpop.f32.mrf.mxu0
    %v688 = vadd.f32 0.0, %v687
    %v689 = vpop.f32.mrf.mxu0
    %690 = vmatprep.mubr.f32.mxu0 0.0
    %691 = vmatmul.mubr.f32.gmra.mxu0 %v205
    %v692 = vpop.f32.mrf.mxu0
    %v693 = vadd.f32 0.0, %v692
    %v694 = vpop.f32.mrf.mxu0
    %695 = vmatprep.mubr.f32.mxu0 0.0
    %696 = vmatmul.mubr.f32.gmra.mxu0 %v208
    %v697 = vpop.f32.mrf.mxu0
    %v698 = vadd.f32 0.0, %v697
    %v699 = vpop.f32.mrf.mxu0
    %700 = vmatprep.mubr.f32.mxu0 0.0
    %701 = vmatmul.mubr.f32.gmra.mxu0 %v211
    %v702 = vpop.f32.mrf.mxu0
    %v703 = vadd.f32 0.0, %v702
    %v704 = vpop.f32.mrf.mxu0
    %705 = vmatprep.mubr.f32.mxu0 0.0
    %706 = vmatmul.mubr.f32.gmra.mxu0 %v214
    %v707 = vpop.f32.mrf.mxu0
    %v708 = vadd.f32 0.0, %v707
    %v709 = vpop.f32.mrf.mxu0
    %710 = vmatprep.mubr.f32.mxu0 0.0
    %711 = vmatmul.mubr.f32.gmra.mxu0 %v217
    %v712 = vpop.f32.mrf.mxu0
    %v713 = vadd.f32 0.0, %v712
    %v714 = vpop.f32.mrf.mxu0
    %715 = vmatprep.mubr.f32.mxu0 0.0
    %716 = vmatmul.mubr.f32.gmra.mxu0 %v220
    %v717 = vpop.f32.mrf.mxu0
    %v718 = vadd.f32 0.0, %v717
    %v719 = vpop.f32.mrf.mxu0
    %720 = vmatprep.mubr.f32.mxu0 0.0
    %721 = vmatmul.mubr.f32.gmra.mxu0 %v223
    %v722 = vpop.f32.mrf.mxu0
    %v723 = vadd.f32 0.0, %v722
    %v724 = vpop.f32.mrf.mxu0
    %725 = vmatprep.mubr.f32.mxu0 0.0
    %726 = vmatmul.mubr.f32.gmra.mxu0 %v226
    %v727 = vpop.f32.mrf.mxu0
    %v728 = vadd.f32 0.0, %v727
    %v729 = vpop.f32.mrf.mxu0
    %730 = vmatprep.mubr.f32.mxu0 0.0
    %731 = vmatmul.mubr.f32.gmra.mxu0 %v229
    %v732 = vpop.f32.mrf.mxu0
    %v733 = vadd.f32 0.0, %v732
    %v734 = vpop.f32.mrf.mxu0
    %735 = vmatprep.mubr.f32.mxu0 0.0
    %736 = vmatmul.mubr.f32.gmra.mxu0 %v232
    %v737 = vpop.f32.mrf.mxu0
    %v738 = vadd.f32 0.0, %v737
    %v739 = vpop.f32.mrf.mxu0
    %740 = vmatprep.mubr.f32.mxu0 0.0
    %741 = vmatmul.mubr.f32.gmra.mxu0 %v235
    %v742 = vpop.f32.mrf.mxu0
    %v743 = vadd.f32 0.0, %v742
    %v744 = vpop.f32.mrf.mxu0
    %745 = vmatprep.mubr.f32.mxu0 0.0
    %746 = vmatmul.mubr.f32.gmra.mxu0 %v238
    %v747 = vpop.f32.mrf.mxu0
    %v748 = vadd.f32 0.0, %v747
    %v749 = vpop.f32.mrf.mxu0
    %750 = vmatprep.mubr.f32.mxu0 0.0
    %751 = vmatmul.mubr.f32.gmra.mxu0 %v241
    %v752 = vpop.f32.mrf.mxu0
    %v753 = vadd.f32 0.0, %v752
    %v754 = vpop.f32.mrf.mxu0
    %755 = vmatprep.mubr.f32.mxu0 0.0
    %756 = vmatmul.mubr.f32.gmra.mxu0 %v244
    %v757 = vpop.f32.mrf.mxu0
    %v758 = vadd.f32 0.0, %v757
    %v759 = vpop.f32.mrf.mxu0
    %760 = vmatprep.mubr.f32.mxu0 0.0
    %761 = vmatmul.mubr.f32.gmra.mxu0 %v247
    %v762 = vpop.f32.mrf.mxu0
    %v763 = vadd.f32 0.0, %v762
    %v764 = vpop.f32.mrf.mxu0
    %765 = vmatprep.mubr.f32.mxu0 0.0
    %766 = vmatmul.mubr.f32.gmra.mxu0 %v250
    %v767 = vpop.f32.mrf.mxu0
    %v768 = vadd.f32 0.0, %v767
    %v769 = vpop.f32.mrf.mxu0
    %770 = vmatprep.mubr.f32.mxu0 0.0
    %771 = vmatmul.mubr.f32.gmra.mxu0 %v253
    %v772 = vpop.f32.mrf.mxu0
    %v773 = vadd.f32 0.0, %v772
    %v774 = vpop.f32.mrf.mxu0
    %775 = vmatprep.mubr.f32.mxu0 0.0
    %776 = vmatmul.mubr.f32.gmra.mxu0 %v256
    %v777 = vpop.f32.mrf.mxu0
    %v778 = vadd.f32 0.0, %v777
    %v779 = vpop.f32.mrf.mxu0
    %780 = vmatprep.mubr.f32.mxu0 0.0
    %781 = vmatmul.mubr.f32.gmra.mxu0 %v259
    %v782 = vpop.f32.mrf.mxu0
    %v783 = vadd.f32 0.0, %v782
    %v784 = vpop.f32.mrf.mxu0
    %785 = vmatprep.mubr.f32.mxu0 0.0
    %786 = vmatmul.mubr.f32.gmra.mxu0 %v262
    %v787 = vpop.f32.mrf.mxu0
    %v788 = vadd.f32 0.0, %v787
    %v789 = vpop.f32.mrf.mxu0
    %790 = vmatprep.mubr.f32.mxu0 0.0
    %791 = vmatmul.mubr.f32.gmra.mxu0 %v265
    %v792 = vpop.f32.mrf.mxu0
    %v793 = vadd.f32 0.0, %v792
    %v794 = vpop.f32.mrf.mxu0
    %795 = vmatprep.mubr.f32.mxu0 0.0
    %796 = vmatmul.mubr.f32.gmra.mxu0 %v268
    %v797 = vpop.f32.mrf.mxu0
    %v798 = vadd.f32 0.0, %v797
    %v799 = vpop.f32.mrf.mxu0
    %800 = vmatprep.mubr.f32.mxu0 0.0
    %801 = vmatmul.mubr.f32.gmra.mxu0 %v271
    %v802 = vpop.f32.mrf.mxu0
    %v803 = vadd.f32 0.0, %v802
    %v804 = vpop.f32.mrf.mxu0
    %805 = vmatprep.mubr.f32.mxu0 0.0
    %806 = vmatmul.mubr.f32.gmra.mxu0 %v274
    %v807 = vpop.f32.mrf.mxu0
    %v808 = vadd.f32 0.0, %v807
    %v809 = vpop.f32.mrf.mxu0
    %810 = vmatprep.mubr.f32.mxu0 0.0
    %811 = vmatmul.mubr.f32.gmra.mxu0 %v277
    %v812 = vpop.f32.mrf.mxu0
    %v813 = vadd.f32 0.0, %v812
    %v814 = vpop.f32.mrf.mxu0
    %815 = vmatprep.mubr.f32.mxu0 0.0
    %816 = vmatmul.mubr.f32.gmra.mxu0 %v280
    %v817 = vpop.f32.mrf.mxu0
    %v818 = vadd.f32 0.0, %v817
    %v819 = vpop.f32.mrf.mxu0
    %820 = vmatprep.mubr.f32.mxu0 0.0
    %821 = vmatmul.mubr.f32.gmra.mxu0 %v283
    %v822 = vpop.f32.mrf.mxu0
    %v823 = vadd.f32 0.0, %v822
    %v824 = vpop.f32.mrf.mxu0
    %825 = vmatprep.mubr.f32.mxu0 0.0
    %826 = vmatmul.mubr.f32.gmra.mxu0 %v286
    %v827 = vpop.f32.mrf.mxu0
    %v828 = vadd.f32 0.0, %v827
    %v829 = vpop.f32.mrf.mxu0
    %830 = vmatprep.mubr.f32.mxu0 0.0
    %831 = vmatmul.mubr.f32.gmra.mxu0 %v289
    %v832 = vpop.f32.mrf.mxu0
    %v833 = vadd.f32 0.0, %v832
    %v834 = vpop.f32.mrf.mxu0
    %835 = vmatprep.mubr.f32.mxu0 0.0
    %836 = vmatmul.mubr.f32.gmra.mxu0 %v292
    %v837 = vpop.f32.mrf.mxu0
    %v838 = vadd.f32 0.0, %v837
    %v839 = vpop.f32.mrf.mxu0
    %840 = vmatprep.mubr.f32.mxu0 0.0
    %841 = vmatmul.mubr.f32.gmra.mxu0 %v295
    %v842 = vpop.f32.mrf.mxu0
    %v843 = vadd.f32 0.0, %v842
    %v844 = vpop.f32.mrf.mxu0
    %845 = vmatprep.mubr.f32.mxu0 0.0
    %846 = vmatmul.mubr.f32.gmra.mxu0 %v298
    %v847 = vpop.f32.mrf.mxu0
    %v848 = vadd.f32 0.0, %v847
    %v849 = vpop.f32.mrf.mxu0
    %850 = vmatprep.mubr.f32.mxu0 0.0
    %851 = vmatmul.mubr.f32.gmra.mxu0 %v301
    %v852 = vpop.f32.mrf.mxu0
    %v853 = vadd.f32 0.0, %v852
    %v854 = vpop.f32.mrf.mxu0
    %855 = vmatprep.mubr.f32.mxu0 0.0
    %856 = vmatmul.mubr.f32.gmra.mxu0 %v304
    %v857 = vpop.f32.mrf.mxu0
    %v858 = vadd.f32 0.0, %v857
    %v859 = vpop.f32.mrf.mxu0
    %860 = vmatprep.mubr.f32.mxu0 0.0
    %861 = vmatmul.mubr.f32.gmra.mxu0 %v307
    %v862 = vpop.f32.mrf.mxu0
    %v863 = vadd.f32 0.0, %v862
    %v864 = vpop.f32.mrf.mxu0
    %865 = vmatprep.mubr.f32.mxu0 0.0
    %866 = vmatmul.mubr.f32.gmra.mxu0 %v310
    %v867 = vpop.f32.mrf.mxu0
    %v868 = vadd.f32 0.0, %v867
    %v869 = vpop.f32.mrf.mxu0
    %870 = vmatprep.mubr.f32.mxu0 0.0
    %871 = vmatmul.mubr.f32.gmra.mxu0 %v313
    %v872 = vpop.f32.mrf.mxu0
    %v873 = vadd.f32 0.0, %v872
    %v874 = vpop.f32.mrf.mxu0
    %875 = vmatprep.mubr.f32.mxu0 0.0
    %876 = vmatmul.mubr.f32.gmra.mxu0 %v316
    %v877 = vpop.f32.mrf.mxu0
    %v878 = vadd.f32 0.0, %v877
    %v879 = vpop.f32.mrf.mxu0
    %880 = vmatprep.mubr.f32.mxu0 0.0
    %881 = vmatmul.mubr.f32.gmra.mxu0 %v319
    %v882 = vpop.f32.mrf.mxu0
    %v883 = vadd.f32 0.0, %v882
    %v884 = vpop.f32.mrf.mxu0
    %885 = vmatprep.mubr.f32.mxu0 0.0
    %886 = vmatmul.mubr.f32.gmra.mxu0 %v322
    %v887 = vpop.f32.mrf.mxu0
    %v888 = vadd.f32 0.0, %v887
    %v889 = vpop.f32.mrf.mxu0
    %890 = vmatprep.mubr.f32.mxu0 0.0
    %891 = vmatmul.mubr.f32.gmra.mxu0 %v325
    %v892 = vpop.f32.mrf.mxu0
    %v893 = vadd.f32 0.0, %v892
    %v894 = vpop.f32.mrf.mxu0
    %895 = vmatprep.mubr.f32.mxu0 0.0
    %896 = vmatmul.mubr.f32.gmra.mxu0 %v328
    %v897 = vpop.f32.mrf.mxu0
    %v898 = vadd.f32 0.0, %v897
    %v899 = vpop.f32.mrf.mxu0
    %900 = vmatprep.mubr.f32.mxu0 0.0
    %901 = vmatmul.mubr.f32.gmra.mxu0 %v331
    %v902 = vpop.f32.mrf.mxu0
    %v903 = vadd.f32 0.0, %v902
    %v904 = vpop.f32.mrf.mxu0
    %905 = vmatprep.mubr.f32.mxu0 0.0
    %906 = vmatmul.mubr.f32.gmra.mxu0 %v334
    %v907 = vpop.f32.mrf.mxu0
    %v908 = vadd.f32 0.0, %v907
    %v909 = vpop.f32.mrf.mxu0
    %910 = vmatprep.mubr.f32.mxu0 0.0
    %911 = vmatmul.mubr.f32.gmra.mxu0 %v337
    %v912 = vpop.f32.mrf.mxu0
    %v913 = vadd.f32 0.0, %v912
    %v914 = vpop.f32.mrf.mxu0
    %915 = vmatprep.mubr.f32.mxu0 0.0
    %916 = vmatmul.mubr.f32.gmra.mxu0 %v340
    %v917 = vpop.f32.mrf.mxu0
    %v918 = vadd.f32 0.0, %v917
    %v919 = vpop.f32.mrf.mxu0
    %920 = vmatprep.mubr.f32.mxu0 0.0
    %921 = vmatmul.mubr.f32.gmra.mxu0 %v343
    %v922 = vpop.f32.mrf.mxu0
    %v923 = vadd.f32 0.0, %v922
    %v924 = vpop.f32.mrf.mxu0
    %925 = vmatprep.mubr.f32.mxu0 0.0
    %926 = vmatmul.mubr.f32.gmra.mxu0 %v346
    %v927 = vpop.f32.mrf.mxu0
    %v928 = vadd.f32 0.0, %v927
    %v929 = vpop.f32.mrf.mxu0
    %930 = vmatprep.mubr.f32.mxu0 0.0
    %931 = vmatmul.mubr.f32.gmra.mxu0 %v349
    %v932 = vpop.f32.mrf.mxu0
    %v933 = vadd.f32 0.0, %v932
    %v934 = vpop.f32.mrf.mxu0
    %935 = vmatprep.mubr.f32.mxu0 0.0
    %936 = vmatmul.mubr.f32.gmra.mxu0 %v352
    %v937 = vpop.f32.mrf.mxu0
    %v938 = vadd.f32 0.0, %v937
    %v939 = vpop.f32.mrf.mxu0
    %940 = vmatprep.mubr.f32.mxu0 0.0
    %941 = vmatmul.mubr.f32.gmra.mxu0 %v355
    %v942 = vpop.f32.mrf.mxu0
    %v943 = vadd.f32 0.0, %v942
    %v944 = vpop.f32.mrf.mxu0
    %945 = vmatprep.mubr.f32.mxu0 0.0
    %946 = vmatmul.mubr.f32.gmra.mxu0 %v358
    %v947 = vpop.f32.mrf.mxu0
    %v948 = vadd.f32 0.0, %v947
    %v949 = vpop.f32.mrf.mxu0
    %950 = vmatprep.mubr.f32.mxu0 0.0
    %951 = vmatmul.mubr.f32.gmra.mxu0 %v361
    %v952 = vpop.f32.mrf.mxu0
    %v953 = vadd.f32 0.0, %v952
    %v954 = vpop.f32.mrf.mxu0
    %955 = vmatprep.mubr.f32.mxu0 0.0
    %956 = vmatmul.mubr.f32.gmra.mxu0 %v364
    %v957 = vpop.f32.mrf.mxu0
    %v958 = vadd.f32 0.0, %v957
    %v959 = vpop.f32.mrf.mxu0
    %960 = vmatprep.mubr.f32.mxu0 0.0
    %961 = vmatmul.mubr.f32.gmra.mxu0 %v367
    %v962 = vpop.f32.mrf.mxu0
    %v963 = vadd.f32 0.0, %v962
    %v964 = vpop.f32.mrf.mxu0
    %965 = vmatprep.mubr.f32.mxu0 0.0
    %966 = vmatmul.mubr.f32.gmra.mxu0 %v370
    %v967 = vpop.f32.mrf.mxu0
    %v968 = vadd.f32 0.0, %v967
    %v969 = vpop.f32.mrf.mxu0
    %970 = vmatprep.mubr.f32.mxu0 0.0
    %971 = vmatmul.mubr.f32.gmra.mxu0 %v373
    %v972 = vpop.f32.mrf.mxu0
    %v973 = vadd.f32 0.0, %v972
    %v974 = vpop.f32.mrf.mxu0
    %975 = vmatprep.mubr.f32.mxu0 0.0
    %976 = vmatmul.mubr.f32.gmra.mxu0 %v376
    %v977 = vpop.f32.mrf.mxu0
    %v978 = vadd.f32 0.0, %v977
    %v979 = vpop.f32.mrf.mxu0
    %980 = vmatprep.mubr.f32.mxu0 0.0
    %981 = vmatmul.mubr.f32.gmra.mxu0 %v379
    %v982 = vpop.f32.mrf.mxu0
    %v983 = vadd.f32 0.0, %v982
    %v984 = vpop.f32.mrf.mxu0
    %985 = vmatprep.mubr.f32.mxu0 0.0
    %986 = vmatmul.mubr.f32.gmra.mxu0 %v382
    %v987 = vpop.f32.mrf.mxu0
    %v988 = vadd.f32 0.0, %v987
    %v989 = vpop.f32.mrf.mxu0
    %990 = vmatprep.mubr.f32.mxu0 0.0
    %991 = vmatmul.mubr.f32.gmra.mxu0 %v385
    %v992 = vpop.f32.mrf.mxu0
    %v993 = vadd.f32 0.0, %v992
    %v994 = vpop.f32.mrf.mxu0
    %995 = vmatprep.mubr.f32.mxu0 0.0
    %996 = vmatmul.mubr.f32.gmra.mxu0 %v388
    %v997 = vpop.f32.mrf.mxu0
    %v998 = vadd.f32 0.0, %v997
    %v999 = vpop.f32.mrf.mxu0
    %1000 = vmatprep.mubr.f32.mxu0 0.0
    %1001 = vmatmul.mubr.f32.gmra.mxu0 %v391
    %v1002 = vpop.f32.mrf.mxu0
    %v1003 = vadd.f32 0.0, %v1002
    %v1004 = vpop.f32.mrf.mxu0
    %1005 = vmatprep.mubr.f32.mxu0 0.0
    %1006 = vmatmul.mubr.f32.gmra.mxu0 %v394
    %v1007 = vpop.f32.mrf.mxu0
    %v1008 = vadd.f32 0.0, %v1007
    %v1009 = vpop.f32.mrf.mxu0
    %1010 = vmatprep.mubr.f32.mxu0 0.0
    %1011 = vmatmul.mubr.f32.gmra.mxu0 %v397
    %v1012 = vpop.f32.mrf.mxu0
    %v1013 = vadd.f32 0.0, %v1012
    %v1014 = vpop.f32.mrf.mxu0
    %1015 = vmatprep.mubr.f32.mxu0 0.0
    %1016 = vmatmul.mubr.f32.gmra.mxu0 %v400
    %v1017 = vpop.f32.mrf.mxu0
    %v1018 = vadd.f32 0.0, %v1017
    %v1019 = vpop.f32.mrf.mxu0
    %1020 = vmatprep.mubr.f32.mxu0 0.0
    %1021 = vmatmul.mubr.f32.gmra.mxu0 %v403
    %v1022 = vpop.f32.mrf.mxu0
    %v1023 = vadd.f32 0.0, %v1022
    %v1024 = vpop.f32.mrf.mxu0
    %1025 = vmatprep.mubr.f32.mxu0 0.0
    %1026 = vmatmul.mubr.f32.gmra.mxu0 %v406
    %v1027 = vpop.f32.mrf.mxu0
    %v1028 = vadd.f32 0.0, %v1027
    %v1029 = vpop.f32.mrf.mxu0
    %1030 = vmatprep.mubr.f32.mxu0 0.0
    %1031 = vmatmul.mubr.f32.gmra.mxu0 %v409
    %v1032 = vpop.f32.mrf.mxu0
    %v1033 = vadd.f32 0.0, %v1032
    %v1034 = vpop.f32.mrf.mxu0
    %1035 = vmatprep.mubr.f32.mxu0 0.0
    %1036 = vmatmul.mubr.f32.gmra.mxu0 %v412
    %v1037 = vpop.f32.mrf.mxu0
    %v1038 = vadd.f32 0.0, %v1037
    %v1039 = vpop.f32.mrf.mxu0
    %1040 = vmatprep.mubr.f32.mxu0 0.0
    %1041 = vmatmul.mubr.f32.gmra.mxu0 %v415
    %v1042 = vpop.f32.mrf.mxu0
    %v1043 = vadd.f32 0.0, %v1042
    %v1044 = vpop.f32.mrf.mxu0
    %1045 = vmatprep.mubr.f32.mxu0 0.0
    %1046 = vmatmul.mubr.f32.gmra.mxu0 %v418
    %v1047 = vpop.f32.mrf.mxu0
    %v1048 = vadd.f32 0.0, %v1047
    %v1049 = vpop.f32.mrf.mxu0
    %1050 = vmatprep.mubr.f32.mxu0 0.0
    %1051 = vmatmul.mubr.f32.gmra.mxu0 %v421
    %v1052 = vpop.f32.mrf.mxu0
    %v1053 = vadd.f32 0.0, %v1052
    %v1054 = vpop.f32.mrf.mxu0
    %1055 = vmatprep.mubr.f32.mxu0 0.0
    %1056 = vmatmul.mubr.f32.gmra.mxu0 %v424
    %v1057 = vpop.f32.mrf.mxu0
    %v1058 = vadd.f32 0.0, %v1057
    %v1059 = vpop.f32.mrf.mxu0
    %1060 = vmatprep.mubr.f32.mxu0 0.0
    %1061 = vmatmul.mubr.f32.gmra.mxu0 %v427
    %v1062 = vpop.f32.mrf.mxu0
    %v1063 = vadd.f32 0.0, %v1062
    %v1064 = vpop.f32.mrf.mxu0
    %1065 = vmatprep.mubr.f32.mxu0 0.0
    %1066 = vmatmul.mubr.f32.gmra.mxu0 %v430
    %v1067 = vpop.f32.mrf.mxu0
    %v1068 = vadd.f32 0.0, %v1067
    %v1069 = vpop.f32.mrf.mxu0
    %1070 = vmatprep.mubr.f32.mxu0 0.0
    %1071 = vmatmul.mubr.f32.gmra.mxu0 %v433
    %v1072 = vpop.f32.mrf.mxu0
    %v1073 = vadd.f32 0.0, %v1072
    %v1074 = vpop.f32.mrf.mxu0
    %1075 = vmatprep.mubr.f32.mxu0 0.0
    %1076 = vmatmul.mubr.f32.gmra.mxu0 %v436
    %v1077 = vpop.f32.mrf.mxu0
    %v1078 = vadd.f32 0.0, %v1077
    %v1079 = vpop.f32.mrf.mxu0
    %1080 = vmatprep.mubr.f32.mxu0 0.0
    %1081 = vmatmul.mubr.f32.gmra.mxu0 %v439
    %v1082 = vpop.f32.mrf.mxu0
    %v1083 = vadd.f32 0.0, %v1082
    %v1084 = vpop.f32.mrf.mxu0
    %1085 = vmatprep.mubr.f32.mxu0 0.0
    %1086 = vmatmul.mubr.f32.gmra.mxu0 %v442
    %v1087 = vpop.f32.mrf.mxu0
    %v1088 = vadd.f32 0.0, %v1087
    %v1089 = vpop.f32.mrf.mxu0
    %1090 = vmatprep.mubr.f32.mxu0 0.0
    %1091 = vmatmul.mubr.f32.gmra.mxu0 %v445
    %v1092 = vpop.f32.mrf.mxu0
    %v1093 = vadd.f32 0.0, %v1092
    %v1094 = vpop.f32.mrf.mxu0
    %1095 = vmatprep.mubr.f32.mxu0 0.0
    %1096 = vmatmul.mubr.f32.gmra.mxu0 %v448
    %v1097 = vpop.f32.mrf.mxu0
    %v1098 = vadd.f32 0.0, %v1097
    %v1099 = vpop.f32.mrf.mxu0
    %1100 = vmatprep.mubr.f32.mxu0 0.0
    %1101 = vmatmul.mubr.f32.gmra.mxu0 %v451
    %v1102 = vpop.f32.mrf.mxu0
    %v1103 = vadd.f32 0.0, %v1102
    %v1104 = vpop.f32.mrf.mxu0
    %1105 = vmatprep.mubr.f32.mxu0 0.0
    %1106 = vmatmul.mubr.f32.gmra.mxu0 %v454
    %v1107 = vpop.f32.mrf.mxu0
    %v1108 = vadd.f32 0.0, %v1107
    %v1109 = vpop.f32.mrf.mxu0
    %1110 = vmatprep.mubr.f32.mxu0 0.0
    %1111 = vmatmul.mubr.f32.gmra.mxu0 %v457
    %v1112 = vpop.f32.mrf.mxu0
    %v1113 = vadd.f32 0.0, %v1112
    %v1114 = vpop.f32.mrf.mxu0
    %1115 = vmatprep.mubr.f32.mxu0 0.0
    %1116 = vmatmul.mubr.f32.gmra.mxu0 %v460
    %v1117 = vpop.f32.mrf.mxu0
    %v1118 = vadd.f32 0.0, %v1117
    %v1119 = vpop.f32.mrf.mxu0
    %1120 = vmatprep.mubr.f32.mxu0 0.0
    %1121 = vmatmul.mubr.f32.gmra.mxu0 %v463
    %v1122 = vpop.f32.mrf.mxu0
    %v1123 = vadd.f32 0.0, %v1122
    %v1124 = vpop.f32.mrf.mxu0
    %1125 = vmatprep.mubr.f32.mxu0 0.0
    %1126 = vmatmul.mubr.f32.gmra.mxu0 %v466
    %v1127 = vpop.f32.mrf.mxu0
    %v1128 = vadd.f32 0.0, %v1127
    %v1129 = vpop.f32.mrf.mxu0
    %1130 = vmatprep.mubr.f32.mxu0 0.0
    %1131 = vmatmul.mubr.f32.gmra.mxu0 %v469
    %v1132 = vpop.f32.mrf.mxu0
    %v1133 = vadd.f32 0.0, %v1132
    %v1134 = vpop.f32.mrf.mxu0
    %1135 = vmatprep.mubr.f32.mxu0 0.0
    %1136 = vmatmul.mubr.f32.gmra.mxu0 %v472
    %v1137 = vpop.f32.mrf.mxu0
    %v1138 = vadd.f32 0.0, %v1137
    %v1139 = vpop.f32.mrf.mxu0
    %1140 = vmatprep.mubr.f32.mxu0 0.0
    %1141 = vmatmul.mubr.f32.gmra.mxu0 %v475
    %v1142 = vpop.f32.mrf.mxu0
    %v1143 = vadd.f32 0.0, %v1142
    %v1144 = vpop.f32.mrf.mxu0
    %1145 = vmatprep.mubr.f32.mxu0 0.0
    %1146 = vmatmul.mubr.f32.gmra.mxu0 %v478
    %v1147 = vpop.f32.mrf.mxu0
    %v1148 = vadd.f32 0.0, %v1147
    %v1149 = vpop.f32.mrf.mxu0
    %1150 = vmatprep.mubr.f32.mxu0 0.0
    %1151 = vmatmul.mubr.f32.gmra.mxu0 %v481
    %v1152 = vpop.f32.mrf.mxu0
    %v1153 = vadd.f32 0.0, %v1152
    %v1154 = vpop.f32.mrf.mxu0
    %1155 = vmatprep.mubr.f32.mxu0 0.0
    %1156 = vmatmul.mubr.f32.gmra.mxu0 %v484
    %v1157 = vpop.f32.mrf.mxu0
    %v1158 = vadd.f32 0.0, %v1157
    %v1159 = vpop.f32.mrf.mxu0
    %1160 = vmatprep.mubr.f32.mxu0 0.0
    %1161 = vmatmul.mubr.f32.gmra.mxu0 %v487
    %v1162 = vpop.f32.mrf.mxu0
    %v1163 = vadd.f32 0.0, %v1162
    %v1164 = vpop.f32.mrf.mxu0
    %1165 = vmatprep.mubr.f32.mxu0 0.0
    %1166 = vmatmul.mubr.f32.gmra.mxu0 %v490
    %v1167 = vpop.f32.mrf.mxu0
    %v1168 = vadd.f32 0.0, %v1167
    %v1169 = vpop.f32.mrf.mxu0
    %1170 = vmatprep.mubr.f32.mxu0 0.0
    %1171 = vmatmul.mubr.f32.gmra.mxu0 %v493
    %v1172 = vpop.f32.mrf.mxu0
    %v1173 = vadd.f32 0.0, %v1172
    %v1174 = vpop.f32.mrf.mxu0
    %1175 = vmatprep.mubr.f32.mxu0 0.0
    %1176 = vmatmul.mubr.f32.gmra.mxu0 %v496
    %v1177 = vpop.f32.mrf.mxu0
    %v1178 = vadd.f32 0.0, %v1177
    %v1179 = vpop.f32.mrf.mxu0
    %1180 = vmatprep.mubr.f32.mxu0 0.0
    %1181 = vmatmul.mubr.f32.gmra.mxu0 %v499
    %v1182 = vpop.f32.mrf.mxu0
    %v1183 = vadd.f32 0.0, %v1182
    %v1184 = vpop.f32.mrf.mxu0
    %1185 = vmatprep.mubr.f32.mxu0 0.0
    %1186 = vmatmul.mubr.f32.gmra.mxu0 %v502
    %v1187 = vpop.f32.mrf.mxu0
    %v1188 = vadd.f32 0.0, %v1187
    %v1189 = vpop.f32.mrf.mxu0
    %1190 = vmatprep.mubr.f32.mxu0 0.0
    %1191 = vmatmul.mubr.f32.gmra.mxu0 %v505
    %v1192 = vpop.f32.mrf.mxu0
    %v1193 = vadd.f32 0.0, %v1192
    %v1194 = vpop.f32.mrf.mxu0
    %1195 = vmatprep.mubr.f32.mxu0 0.0
    %1196 = vmatmul.mubr.f32.gmra.mxu0 %v508
    %v1197 = vpop.f32.mrf.mxu0
    %v1198 = vadd.f32 0.0, %v1197
    %v1199 = vpop.f32.mrf.mxu0
    %1200 = vmatprep.mubr.f32.mxu0 0.0
    %1201 = vmatmul.mubr.f32.gmra.mxu0 %v511
    %v1202 = vpop.f32.mrf.mxu0
    %v1203 = vadd.f32 0.0, %v1202
    %v1204 = vpop.f32.mrf.mxu0
    %1205 = vmatprep.mubr.f32.mxu0 0.0
    %1206 = vmatmul.mubr.f32.gmra.mxu0 %v514
    %v1207 = vpop.f32.mrf.mxu0
    %v1208 = vadd.f32 0.0, %v1207
    %v1209 = vpop.f32.mrf.mxu0
    %1210 = vmatprep.mubr.f32.mxu0 0.0
    %1211 = vmatmul.mubr.f32.gmra.mxu0 %v517
    %v1212 = vpop.f32.mrf.mxu0
    %v1213 = vadd.f32 0.0, %v1212
    %v1214 = vpop.f32.mrf.mxu0
    %1215 = vmatprep.mubr.f32.mxu0 0.0
    %1216 = vmatmul.mubr.f32.gmra.mxu0 %v520
    %v1217 = vpop.f32.mrf.mxu0
    %v1218 = vadd.f32 0.0, %v1217
    %v1219 = vpop.f32.mrf.mxu0
    %1220 = vmatprep.mubr.f32.mxu0 0.0
    %1221 = vmatmul.mubr.f32.gmra.mxu0 %v523
    %v1222 = vpop.f32.mrf.mxu0
    %v1223 = vadd.f32 0.0, %v1222
    %v1224 = vpop.f32.mrf.mxu0
    %1225 = vmatprep.mubr.f32.mxu0 0.0
    %1226 = vmatmul.mubr.f32.gmra.mxu0 %v526
    %v1227 = vpop.f32.mrf.mxu0
    %v1228 = vadd.f32 0.0, %v1227
    %v1229 = vpop.f32.mrf.mxu0
    %1230 = vmatprep.mubr.f32.mxu0 0.0
    %1231 = vmatmul.mubr.f32.gmra.mxu0 %v529
    %v1232 = vpop.f32.mrf.mxu0
    %v1233 = vadd.f32 0.0, %v1232
    %v1234 = vpop.f32.mrf.mxu0
    %1235 = vdwg.mxu0
    %vm1236 = vcmask 31744
    %1237 = vst.msk [vmem:[%s2] sm:$0xff] %vm1236, %v598
    %1238 = vst.msk [vmem:[%s2 + $0x8] sm:$0xff] %vm1236, %v603
    %1239 = vst.msk [vmem:[%s2 + $0x10] sm:$0xff] %vm1236, %v608
    %1240 = vst.msk [vmem:[%s2 + $0x18] sm:$0xff] %vm1236, %v613
    %1241 = vst.msk [vmem:[%s2 + $0x20] sm:$0xff] %vm1236, %v618
    %1242 = vst.msk [vmem:[%s2 + $0x28] sm:$0xff] %vm1236, %v623
    %1243 = vst.msk [vmem:[%s2 + $0x30] sm:$0xff] %vm1236, %v628
    %1244 = vst.msk [vmem:[%s2 + $0x38] sm:$0xff] %vm1236, %v633
    %1245 = vst.msk [vmem:[%s2 + $0x40] sm:$0xff] %vm1236, %v638
    %1246 = vst.msk [vmem:[%s2 + $0x48] sm:$0xff] %vm1236, %v643
    %1247 = vst.msk [vmem:[%s2 + $0x50] sm:$0xff] %vm1236, %v648
    %1248 = vst.msk [vmem:[%s2 + $0x58] sm:$0xff] %vm1236, %v653
    %1249 = vst.msk [vmem:[%s2 + $0x60] sm:$0xff] %vm1236, %v658
    %1250 = vst.msk [vmem:[%s2 + $0x68] sm:$0xff] %vm1236, %v663
    %1251 = vst.msk [vmem:[%s2 + $0x70] sm:$0xff] %vm1236, %v668
    %1252 = vst.msk [vmem:[%s2 + $0x78] sm:$0xff] %vm1236, %v673
    %1253 = vst.msk [vmem:[%s2 + $0x80] sm:$0xff] %vm1236, %v678
    %1254 = vst.msk [vmem:[%s2 + $0x88] sm:$0xff] %vm1236, %v683
    %1255 = vst.msk [vmem:[%s2 + $0x90] sm:$0xff] %vm1236, %v688
    %1256 = vst.msk [vmem:[%s2 + $0x98] sm:$0xff] %vm1236, %v693
    %1257 = vst.msk [vmem:[%s2 + $0xa0] sm:$0xff] %vm1236, %v698
    %1258 = vst.msk [vmem:[%s2 + $0xa8] sm:$0xff] %vm1236, %v703
    %1259 = vst.msk [vmem:[%s2 + $0xb0] sm:$0xff] %vm1236, %v708
    %1260 = vst.msk [vmem:[%s2 + $0xb8] sm:$0xff] %vm1236, %v713
    %1261 = vst.msk [vmem:[%s2 + $0xc0] sm:$0xff] %vm1236, %v718
    %1262 = vst.msk [vmem:[%s2 + $0xc8] sm:$0xff] %vm1236, %v723
    %1263 = vst.msk [vmem:[%s2 + $0xd0] sm:$0xff] %vm1236, %v728
    %1264 = vst.msk [vmem:[%s2 + $0xd8] sm:$0xff] %vm1236, %v733
    %1265 = vst.msk [vmem:[%s2 + $0xe0] sm:$0xff] %vm1236, %v738
    %1266 = vst.msk [vmem:[%s2 + $0xe8] sm:$0xff] %vm1236, %v743
    %1267 = vst.msk [vmem:[%s2 + $0xf0] sm:$0xff] %vm1236, %v748
    %1268 = vst.msk [vmem:[%s2 + $0xf8] sm:$0xff] %vm1236, %v753
    %1269 = vst.msk [vmem:[%s2 + $0x100] sm:$0xff] %vm1236, %v758
    %1270 = vst.msk [vmem:[%s2 + $0x108] sm:$0xff] %vm1236, %v763
    %1271 = vst.msk [vmem:[%s2 + $0x110] sm:$0xff] %vm1236, %v768
    %1272 = vst.msk [vmem:[%s2 + $0x118] sm:$0xff] %vm1236, %v773
    %1273 = vst.msk [vmem:[%s2 + $0x120] sm:$0xff] %vm1236, %v778
    %1274 = vst.msk [vmem:[%s2 + $0x128] sm:$0xff] %vm1236, %v783
    %1275 = vst.msk [vmem:[%s2 + $0x130] sm:$0xff] %vm1236, %v788
    %1276 = vst.msk [vmem:[%s2 + $0x138] sm:$0xff] %vm1236, %v793
    %1277 = vst.msk [vmem:[%s2 + $0x140] sm:$0xff] %vm1236, %v798
    %1278 = vst.msk [vmem:[%s2 + $0x148] sm:$0xff] %vm1236, %v803
    %1279 = vst.msk [vmem:[%s2 + $0x150] sm:$0xff] %vm1236, %v808
    %1280 = vst.msk [vmem:[%s2 + $0x158] sm:$0xff] %vm1236, %v813
    %1281 = vst.msk [vmem:[%s2 + $0x160] sm:$0xff] %vm1236, %v818
    %1282 = vst.msk [vmem:[%s2 + $0x168] sm:$0xff] %vm1236, %v823
    %1283 = vst.msk [vmem:[%s2 + $0x170] sm:$0xff] %vm1236, %v828
    %1284 = vst.msk [vmem:[%s2 + $0x178] sm:$0xff] %vm1236, %v833
    %1285 = vst.msk [vmem:[%s2 + $0x180] sm:$0xff] %vm1236, %v838
    %1286 = vst.msk [vmem:[%s2 + $0x188] sm:$0xff] %vm1236, %v843
    %1287 = vst.msk [vmem:[%s2 + $0x190] sm:$0xff] %vm1236, %v848
    %1288 = vst.msk [vmem:[%s2 + $0x198] sm:$0xff] %vm1236, %v853
    %1289 = vst.msk [vmem:[%s2 + $0x1a0] sm:$0xff] %vm1236, %v858
    %1290 = vst.msk [vmem:[%s2 + $0x1a8] sm:$0xff] %vm1236, %v863
    %1291 = vst.msk [vmem:[%s2 + $0x1b0] sm:$0xff] %vm1236, %v868
    %1292 = vst.msk [vmem:[%s2 + $0x1b8] sm:$0xff] %vm1236, %v873
    %1293 = vst.msk [vmem:[%s2 + $0x1c0] sm:$0xff] %vm1236, %v878
    %1294 = vst.msk [vmem:[%s2 + $0x1c8] sm:$0xff] %vm1236, %v883
    %1295 = vst.msk [vmem:[%s2 + $0x1d0] sm:$0xff] %vm1236, %v888
    %1296 = vst.msk [vmem:[%s2 + $0x1d8] sm:$0xff] %vm1236, %v893
    %1297 = vst.msk [vmem:[%s2 + $0x1e0] sm:$0xff] %vm1236, %v898
    %1298 = vst.msk [vmem:[%s2 + $0x1e8] sm:$0xff] %vm1236, %v903
    %1299 = vst.msk [vmem:[%s2 + $0x1f0] sm:$0xff] %vm1236, %v908
    %1300 = vst.msk [vmem:[%s2 + $0x1f8] sm:$0xff] %vm1236, %v913
    %1301 = vst.msk [vmem:[%s2 + $0x200] sm:$0xff] %vm1236, %v918
    %1302 = vst.msk [vmem:[%s2 + $0x208] sm:$0xff] %vm1236, %v923
    %1303 = vst.msk [vmem:[%s2 + $0x210] sm:$0xff] %vm1236, %v928
    %1304 = vst.msk [vmem:[%s2 + $0x218] sm:$0xff] %vm1236, %v933
    %1305 = vst.msk [vmem:[%s2 + $0x220] sm:$0xff] %vm1236, %v938
    %1306 = vst.msk [vmem:[%s2 + $0x228] sm:$0xff] %vm1236, %v943
    %1307 = vst.msk [vmem:[%s2 + $0x230] sm:$0xff] %vm1236, %v948
    %1308 = vst.msk [vmem:[%s2 + $0x238] sm:$0xff] %vm1236, %v953
    %1309 = vst.msk [vmem:[%s2 + $0x240] sm:$0xff] %vm1236, %v958
    %1310 = vst.msk [vmem:[%s2 + $0x248] sm:$0xff] %vm1236, %v963
    %1311 = vst.msk [vmem:[%s2 + $0x250] sm:$0xff] %vm1236, %v968
    %1312 = vst.msk [vmem:[%s2 + $0x258] sm:$0xff] %vm1236, %v973
    %1313 = vst.msk [vmem:[%s2 + $0x260] sm:$0xff] %vm1236, %v978
    %1314 = vst.msk [vmem:[%s2 + $0x268] sm:$0xff] %vm1236, %v983
    %1315 = vst.msk [vmem:[%s2 + $0x270] sm:$0xff] %vm1236, %v988
    %1316 = vst.msk [vmem:[%s2 + $0x278] sm:$0xff] %vm1236, %v993
    %1317 = vst.msk [vmem:[%s2 + $0x280] sm:$0xff] %vm1236, %v998
    %1318 = vst.msk [vmem:[%s2 + $0x288] sm:$0xff] %vm1236, %v1003
    %1319 = vst.msk [vmem:[%s2 + $0x290] sm:$0xff] %vm1236, %v1008
    %1320 = vst.msk [vmem:[%s2 + $0x298] sm:$0xff] %vm1236, %v1013
    %1321 = vst.msk [vmem:[%s2 + $0x2a0] sm:$0xff] %vm1236, %v1018
    %1322 = vst.msk [vmem:[%s2 + $0x2a8] sm:$0xff] %vm1236, %v1023
    %1323 = vst.msk [vmem:[%s2 + $0x2b0] sm:$0xff] %vm1236, %v1028
    %1324 = vst.msk [vmem:[%s2 + $0x2b8] sm:$0xff] %vm1236, %v1033
    %1325 = vst.msk [vmem:[%s2 + $0x2c0] sm:$0xff] %vm1236, %v1038
    %1326 = vst.msk [vmem:[%s2 + $0x2c8] sm:$0xff] %vm1236, %v1043
    %1327 = vst.msk [vmem:[%s2 + $0x2d0] sm:$0xff] %vm1236, %v1048
    %1328 = vst.msk [vmem:[%s2 + $0x2d8] sm:$0xff] %vm1236, %v1053
    %1329 = vst.msk [vmem:[%s2 + $0x2e0] sm:$0xff] %vm1236, %v1058
    %1330 = vst.msk [vmem:[%s2 + $0x2e8] sm:$0xff] %vm1236, %v1063
    %1331 = vst.msk [vmem:[%s2 + $0x2f0] sm:$0xff] %vm1236, %v1068
    %1332 = vst.msk [vmem:[%s2 + $0x2f8] sm:$0xff] %vm1236, %v1073
    %1333 = vst.msk [vmem:[%s2 + $0x300] sm:$0xff] %vm1236, %v1078
    %1334 = vst.msk [vmem:[%s2 + $0x308] sm:$0xff] %vm1236, %v1083
    %1335 = vst.msk [vmem:[%s2 + $0x310] sm:$0xff] %vm1236, %v1088
    %1336 = vst.msk [vmem:[%s2 + $0x318] sm:$0xff] %vm1236, %v1093
    %1337 = vst.msk [vmem:[%s2 + $0x320] sm:$0xff] %vm1236, %v1098
    %1338 = vst.msk [vmem:[%s2 + $0x328] sm:$0xff] %vm1236, %v1103
    %1339 = vst.msk [vmem:[%s2 + $0x330] sm:$0xff] %vm1236, %v1108
    %1340 = vst.msk [vmem:[%s2 + $0x338] sm:$0xff] %vm1236, %v1113
    %1341 = vst.msk [vmem:[%s2 + $0x340] sm:$0xff] %vm1236, %v1118
    %1342 = vst.msk [vmem:[%s2 + $0x348] sm:$0xff] %vm1236, %v1123
    %1343 = vst.msk [vmem:[%s2 + $0x350] sm:$0xff] %vm1236, %v1128
    %1344 = vst.msk [vmem:[%s2 + $0x358] sm:$0xff] %vm1236, %v1133
    %1345 = vst.msk [vmem:[%s2 + $0x360] sm:$0xff] %vm1236, %v1138
    %1346 = vst.msk [vmem:[%s2 + $0x368] sm:$0xff] %vm1236, %v1143
    %1347 = vst.msk [vmem:[%s2 + $0x370] sm:$0xff] %vm1236, %v1148
    %1348 = vst.msk [vmem:[%s2 + $0x378] sm:$0xff] %vm1236, %v1153
    %1349 = vst.msk [vmem:[%s2 + $0x380] sm:$0xff] %vm1236, %v1158
    %1350 = vst.msk [vmem:[%s2 + $0x388] sm:$0xff] %vm1236, %v1163
    %1351 = vst.msk [vmem:[%s2 + $0x390] sm:$0xff] %vm1236, %v1168
    %1352 = vst.msk [vmem:[%s2 + $0x398] sm:$0xff] %vm1236, %v1173
    %1353 = vst.msk [vmem:[%s2 + $0x3a0] sm:$0xff] %vm1236, %v1178
    %1354 = vst.msk [vmem:[%s2 + $0x3a8] sm:$0xff] %vm1236, %v1183
    %1355 = vst.msk [vmem:[%s2 + $0x3b0] sm:$0xff] %vm1236, %v1188
    %1356 = vst.msk [vmem:[%s2 + $0x3b8] sm:$0xff] %vm1236, %v1193
    %1357 = vst.msk [vmem:[%s2 + $0x3c0] sm:$0xff] %vm1236, %v1198
    %1358 = vst.msk [vmem:[%s2 + $0x3c8] sm:$0xff] %vm1236, %v1203
    %1359 = vst.msk [vmem:[%s2 + $0x3d0] sm:$0xff] %vm1236, %v1208
    %1360 = vst.msk [vmem:[%s2 + $0x3d8] sm:$0xff] %vm1236, %v1213
    %1361 = vst.msk [vmem:[%s2 + $0x3e0] sm:$0xff] %vm1236, %v1218
    %1362 = vst.msk [vmem:[%s2 + $0x3e8] sm:$0xff] %vm1236, %v1223
    %1363 = vst.msk [vmem:[%s2 + $0x3f0] sm:$0xff] %vm1236, %v1228
    %1364 = vst.msk [vmem:[%s2 + $0x3f8] sm:$0xff] %vm1236, %v1233
    %p1365 = scmp.eq.s32.totalorder 0, 0
    // Predicated region
    $region10: #{tpu_custom_call.1} parent=1 // pred_check
      %p1366 = pneg %p1365
    $region11: #{tpu_custom_call.1} parent=1 // pred_check_branch
      %1368 = sbr.rel (%p1366) target = $region13
    $region12: #{tpu_custom_call.1} parent=1 // pred_region
      %vm1369 = vcmask 24576
      %1370 = vst.msk [vmem:[#allocation2] sm:$0x1] %vm1369, 0.0
      %1371 = vst.msk [vmem:[#allocation4] sm:$0x1] %vm1369, 0.0
    $region13: #{tpu_custom_call.1} parent=1 // pred_fallthru
      _
    %v1372 = vld [vmem:[#allocation2] sm:$0x1]
    %v1373 = vsel %vm1236, %v598, 0.0
    %v1374 = vsel %vm1236, %v603, 0.0
    %v1375 = vadd.f32 %v1373, %v1374
    %v1376 = vsel %vm1236, %v608, 0.0
    %v1377 = vadd.f32 %v1375, %v1376
    %v1378 = vsel %vm1236, %v613, 0.0
    %v1379 = vadd.f32 %v1377, %v1378
    %v1380 = vsel %vm1236, %v618, 0.0
    %v1381 = vadd.f32 %v1379, %v1380
    %v1382 = vsel %vm1236, %v623, 0.0
    %v1383 = vadd.f32 %v1381, %v1382
    %v1384 = vsel %vm1236, %v628, 0.0
    %v1385 = vadd.f32 %v1383, %v1384
    %v1386 = vsel %vm1236, %v633, 0.0
    %v1387 = vadd.f32 %v1385, %v1386
    %v1388 = vsel %vm1236, %v638, 0.0
    %v1389 = vadd.f32 %v1387, %v1388
    %v1390 = vsel %vm1236, %v643, 0.0
    %v1391 = vadd.f32 %v1389, %v1390
    %v1392 = vsel %vm1236, %v648, 0.0
    %v1393 = vadd.f32 %v1391, %v1392
    %v1394 = vsel %vm1236, %v653, 0.0
    %v1395 = vadd.f32 %v1393, %v1394
    %v1396 = vsel %vm1236, %v658, 0.0
    %v1397 = vadd.f32 %v1395, %v1396
    %v1398 = vsel %vm1236, %v663, 0.0
    %v1399 = vadd.f32 %v1397, %v1398
    %v1400 = vsel %vm1236, %v668, 0.0
    %v1401 = vadd.f32 %v1399, %v1400
    %v1402 = vsel %vm1236, %v673, 0.0
    %v1403 = vadd.f32 %v1401, %v1402
    %v1404 = vsel %vm1236, %v678, 0.0
    %v1405 = vadd.f32 %v1403, %v1404
    %v1406 = vsel %vm1236, %v683, 0.0
    %v1407 = vadd.f32 %v1405, %v1406
    %v1408 = vsel %vm1236, %v688, 0.0
    %v1409 = vadd.f32 %v1407, %v1408
    %v1410 = vsel %vm1236, %v693, 0.0
    %v1411 = vadd.f32 %v1409, %v1410
    %v1412 = vsel %vm1236, %v698, 0.0
    %v1413 = vadd.f32 %v1411, %v1412
    %v1414 = vsel %vm1236, %v703, 0.0
    %v1415 = vadd.f32 %v1413, %v1414
    %v1416 = vsel %vm1236, %v708, 0.0
    %v1417 = vadd.f32 %v1415, %v1416
    %v1418 = vsel %vm1236, %v713, 0.0
    %v1419 = vadd.f32 %v1417, %v1418
    %v1420 = vsel %vm1236, %v718, 0.0
    %v1421 = vadd.f32 %v1419, %v1420
    %v1422 = vsel %vm1236, %v723, 0.0
    %v1423 = vadd.f32 %v1421, %v1422
    %v1424 = vsel %vm1236, %v728, 0.0
    %v1425 = vadd.f32 %v1423, %v1424
    %v1426 = vsel %vm1236, %v733, 0.0
    %v1427 = vadd.f32 %v1425, %v1426
    %v1428 = vsel %vm1236, %v738, 0.0
    %v1429 = vadd.f32 %v1427, %v1428
    %v1430 = vsel %vm1236, %v743, 0.0
    %v1431 = vadd.f32 %v1429, %v1430
    %v1432 = vsel %vm1236, %v748, 0.0
    %v1433 = vadd.f32 %v1431, %v1432
    %v1434 = vsel %vm1236, %v753, 0.0
    %v1435 = vadd.f32 %v1433, %v1434
    %v1436 = vsel %vm1236, %v758, 0.0
    %v1437 = vadd.f32 %v1435, %v1436
    %v1438 = vsel %vm1236, %v763, 0.0
    %v1439 = vadd.f32 %v1437, %v1438
    %v1440 = vsel %vm1236, %v768, 0.0
    %v1441 = vadd.f32 %v1439, %v1440
    %v1442 = vsel %vm1236, %v773, 0.0
    %v1443 = vadd.f32 %v1441, %v1442
    %v1444 = vsel %vm1236, %v778, 0.0
    %v1445 = vadd.f32 %v1443, %v1444
    %v1446 = vsel %vm1236, %v783, 0.0
    %v1447 = vadd.f32 %v1445, %v1446
    %v1448 = vsel %vm1236, %v788, 0.0
    %v1449 = vadd.f32 %v1447, %v1448
    %v1450 = vsel %vm1236, %v793, 0.0
    %v1451 = vadd.f32 %v1449, %v1450
    %v1452 = vsel %vm1236, %v798, 0.0
    %v1453 = vadd.f32 %v1451, %v1452
    %v1454 = vsel %vm1236, %v803, 0.0
    %v1455 = vadd.f32 %v1453, %v1454
    %v1456 = vsel %vm1236, %v808, 0.0
    %v1457 = vadd.f32 %v1455, %v1456
    %v1458 = vsel %vm1236, %v813, 0.0
    %v1459 = vadd.f32 %v1457, %v1458
    %v1460 = vsel %vm1236, %v818, 0.0
    %v1461 = vadd.f32 %v1459, %v1460
    %v1462 = vsel %vm1236, %v823, 0.0
    %v1463 = vadd.f32 %v1461, %v1462
    %v1464 = vsel %vm1236, %v828, 0.0
    %v1465 = vadd.f32 %v1463, %v1464
    %v1466 = vsel %vm1236, %v833, 0.0
    %v1467 = vadd.f32 %v1465, %v1466
    %v1468 = vsel %vm1236, %v838, 0.0
    %v1469 = vadd.f32 %v1467, %v1468
    %v1470 = vsel %vm1236, %v843, 0.0
    %v1471 = vadd.f32 %v1469, %v1470
    %v1472 = vsel %vm1236, %v848, 0.0
    %v1473 = vadd.f32 %v1471, %v1472
    %v1474 = vsel %vm1236, %v853, 0.0
    %v1475 = vadd.f32 %v1473, %v1474
    %v1476 = vsel %vm1236, %v858, 0.0
    %v1477 = vadd.f32 %v1475, %v1476
    %v1478 = vsel %vm1236, %v863, 0.0
    %v1479 = vadd.f32 %v1477, %v1478
    %v1480 = vsel %vm1236, %v868, 0.0
    %v1481 = vadd.f32 %v1479, %v1480
    %v1482 = vsel %vm1236, %v873, 0.0
    %v1483 = vadd.f32 %v1481, %v1482
    %v1484 = vsel %vm1236, %v878, 0.0
    %v1485 = vadd.f32 %v1483, %v1484
    %v1486 = vsel %vm1236, %v883, 0.0
    %v1487 = vadd.f32 %v1485, %v1486
    %v1488 = vsel %vm1236, %v888, 0.0
    %v1489 = vadd.f32 %v1487, %v1488
    %v1490 = vsel %vm1236, %v893, 0.0
    %v1491 = vadd.f32 %v1489, %v1490
    %v1492 = vsel %vm1236, %v898, 0.0
    %v1493 = vadd.f32 %v1491, %v1492
    %v1494 = vsel %vm1236, %v903, 0.0
    %v1495 = vadd.f32 %v1493, %v1494
    %v1496 = vsel %vm1236, %v908, 0.0
    %v1497 = vadd.f32 %v1495, %v1496
    %v1498 = vsel %vm1236, %v913, 0.0
    %v1499 = vadd.f32 %v1497, %v1498
    %v1500 = vsel %vm1236, %v918, 0.0
    %v1501 = vadd.f32 %v1499, %v1500
    %v1502 = vsel %vm1236, %v923, 0.0
    %v1503 = vadd.f32 %v1501, %v1502
    %v1504 = vsel %vm1236, %v928, 0.0
    %v1505 = vadd.f32 %v1503, %v1504
    %v1506 = vsel %vm1236, %v933, 0.0
    %v1507 = vadd.f32 %v1505, %v1506
    %v1508 = vsel %vm1236, %v938, 0.0
    %v1509 = vadd.f32 %v1507, %v1508
    %v1510 = vsel %vm1236, %v943, 0.0
    %v1511 = vadd.f32 %v1509, %v1510
    %v1512 = vsel %vm1236, %v948, 0.0
    %v1513 = vadd.f32 %v1511, %v1512
    %v1514 = vsel %vm1236, %v953, 0.0
    %v1515 = vadd.f32 %v1513, %v1514
    %v1516 = vsel %vm1236, %v958, 0.0
    %v1517 = vadd.f32 %v1515, %v1516
    %v1518 = vsel %vm1236, %v963, 0.0
    %v1519 = vadd.f32 %v1517, %v1518
    %v1520 = vsel %vm1236, %v968, 0.0
    %v1521 = vadd.f32 %v1519, %v1520
    %v1522 = vsel %vm1236, %v973, 0.0
    %v1523 = vadd.f32 %v1521, %v1522
    %v1524 = vsel %vm1236, %v978, 0.0
    %v1525 = vadd.f32 %v1523, %v1524
    %v1526 = vsel %vm1236, %v983, 0.0
    %v1527 = vadd.f32 %v1525, %v1526
    %v1528 = vsel %vm1236, %v988, 0.0
    %v1529 = vadd.f32 %v1527, %v1528
    %v1530 = vsel %vm1236, %v993, 0.0
    %v1531 = vadd.f32 %v1529, %v1530
    %v1532 = vsel %vm1236, %v998, 0.0
    %v1533 = vadd.f32 %v1531, %v1532
    %v1534 = vsel %vm1236, %v1003, 0.0
    %v1535 = vadd.f32 %v1533, %v1534
    %v1536 = vsel %vm1236, %v1008, 0.0
    %v1537 = vadd.f32 %v1535, %v1536
    %v1538 = vsel %vm1236, %v1013, 0.0
    %v1539 = vadd.f32 %v1537, %v1538
    %v1540 = vsel %vm1236, %v1018, 0.0
    %v1541 = vadd.f32 %v1539, %v1540
    %v1542 = vsel %vm1236, %v1023, 0.0
    %v1543 = vadd.f32 %v1541, %v1542
    %v1544 = vsel %vm1236, %v1028, 0.0
    %v1545 = vadd.f32 %v1543, %v1544
    %v1546 = vsel %vm1236, %v1033, 0.0
    %v1547 = vadd.f32 %v1545, %v1546
    %v1548 = vsel %vm1236, %v1038, 0.0
    %v1549 = vadd.f32 %v1547, %v1548
    %v1550 = vsel %vm1236, %v1043, 0.0
    %v1551 = vadd.f32 %v1549, %v1550
    %v1552 = vsel %vm1236, %v1048, 0.0
    %v1553 = vadd.f32 %v1551, %v1552
    %v1554 = vsel %vm1236, %v1053, 0.0
    %v1555 = vadd.f32 %v1553, %v1554
    %v1556 = vsel %vm1236, %v1058, 0.0
    %v1557 = vadd.f32 %v1555, %v1556
    %v1558 = vsel %vm1236, %v1063, 0.0
    %v1559 = vadd.f32 %v1557, %v1558
    %v1560 = vsel %vm1236, %v1068, 0.0
    %v1561 = vadd.f32 %v1559, %v1560
    %v1562 = vsel %vm1236, %v1073, 0.0
    %v1563 = vadd.f32 %v1561, %v1562
    %v1564 = vsel %vm1236, %v1078, 0.0
    %v1565 = vadd.f32 %v1563, %v1564
    %v1566 = vsel %vm1236, %v1083, 0.0
    %v1567 = vadd.f32 %v1565, %v1566
    %v1568 = vsel %vm1236, %v1088, 0.0
    %v1569 = vadd.f32 %v1567, %v1568
    %v1570 = vsel %vm1236, %v1093, 0.0
    %v1571 = vadd.f32 %v1569, %v1570
    %v1572 = vsel %vm1236, %v1098, 0.0
    %v1573 = vadd.f32 %v1571, %v1572
    %v1574 = vsel %vm1236, %v1103, 0.0
    %v1575 = vadd.f32 %v1573, %v1574
    %v1576 = vsel %vm1236, %v1108, 0.0
    %v1577 = vadd.f32 %v1575, %v1576
    %v1578 = vsel %vm1236, %v1113, 0.0
    %v1579 = vadd.f32 %v1577, %v1578
    %v1580 = vsel %vm1236, %v1118, 0.0
    %v1581 = vadd.f32 %v1579, %v1580
    %v1582 = vsel %vm1236, %v1123, 0.0
    %v1583 = vadd.f32 %v1581, %v1582
    %v1584 = vsel %vm1236, %v1128, 0.0
    %v1585 = vadd.f32 %v1583, %v1584
    %v1586 = vsel %vm1236, %v1133, 0.0
    %v1587 = vadd.f32 %v1585, %v1586
    %v1588 = vsel %vm1236, %v1138, 0.0
    %v1589 = vadd.f32 %v1587, %v1588
    %v1590 = vsel %vm1236, %v1143, 0.0
    %v1591 = vadd.f32 %v1589, %v1590
    %v1592 = vsel %vm1236, %v1148, 0.0
    %v1593 = vadd.f32 %v1591, %v1592
    %v1594 = vsel %vm1236, %v1153, 0.0
    %v1595 = vadd.f32 %v1593, %v1594
    %v1596 = vsel %vm1236, %v1158, 0.0
    %v1597 = vadd.f32 %v1595, %v1596
    %v1598 = vsel %vm1236, %v1163, 0.0
    %v1599 = vadd.f32 %v1597, %v1598
    %v1600 = vsel %vm1236, %v1168, 0.0
    %v1601 = vadd.f32 %v1599, %v1600
    %v1602 = vsel %vm1236, %v1173, 0.0
    %v1603 = vadd.f32 %v1601, %v1602
    %v1604 = vsel %vm1236, %v1178, 0.0
    %v1605 = vadd.f32 %v1603, %v1604
    %v1606 = vsel %vm1236, %v1183, 0.0
    %v1607 = vadd.f32 %v1605, %v1606
    %v1608 = vsel %vm1236, %v1188, 0.0
    %v1609 = vadd.f32 %v1607, %v1608
    %v1610 = vsel %vm1236, %v1193, 0.0
    %v1611 = vadd.f32 %v1609, %v1610
    %v1612 = vsel %vm1236, %v1198, 0.0
    %v1613 = vadd.f32 %v1611, %v1612
    %v1614 = vsel %vm1236, %v1203, 0.0
    %v1615 = vadd.f32 %v1613, %v1614
    %v1616 = vsel %vm1236, %v1208, 0.0
    %v1617 = vadd.f32 %v1615, %v1616
    %v1618 = vsel %vm1236, %v1213, 0.0
    %v1619 = vadd.f32 %v1617, %v1618
    %v1620 = vsel %vm1236, %v1218, 0.0
    %v1621 = vadd.f32 %v1619, %v1620
    %v1622 = vsel %vm1236, %v1223, 0.0
    %v1623 = vadd.f32 %v1621, %v1622
    %v1624 = vsel %vm1236, %v1228, 0.0
    %v1625 = vadd.f32 %v1623, %v1624
    %v1626 = vsel %vm1236, %v1233, 0.0
    %v1627 = vadd.f32 %v1625, %v1626
    %v1628 = vrot.slane %v1627, 4
    %v1629 = vadd.f32 %v1627, %v1628
    %v1630 = vrot.slane %v1629, 2
    %v1631 = vadd.f32 %v1629, %v1630
    %v1632 = vrot.slane %v1631, 1
    %v1633 = vadd.f32 %v1631, %v1632
    %v1634 = vadd.f32 %v1372, %v1633
    %vm1635 = vcmask 24576
    %1636 = vst.msk [vmem:[#allocation2] sm:$0x1] %vm1635, %v1634
    %v1637 = vld [vmem:[#allocation4] sm:$0x1]
    %v1638 = vmul.f32 %v598, %v598
    %v1639 = vmul.f32 %v603, %v603
    %v1640 = vmul.f32 %v608, %v608
    %v1641 = vmul.f32 %v613, %v613
    %v1642 = vmul.f32 %v618, %v618
    %v1643 = vmul.f32 %v623, %v623
    %v1644 = vmul.f32 %v628, %v628
    %v1645 = vmul.f32 %v633, %v633
    %v1646 = vmul.f32 %v638, %v638
    %v1647 = vmul.f32 %v643, %v643
    %v1648 = vmul.f32 %v648, %v648
    %v1649 = vmul.f32 %v653, %v653
    %v1650 = vmul.f32 %v658, %v658
    %v1651 = vmul.f32 %v663, %v663
    %v1652 = vmul.f32 %v668, %v668
    %v1653 = vmul.f32 %v673, %v673
    %v1654 = vmul.f32 %v678, %v678
    %v1655 = vmul.f32 %v683, %v683
    %v1656 = vmul.f32 %v688, %v688
    %v1657 = vmul.f32 %v693, %v693
    %v1658 = vmul.f32 %v698, %v698
    %v1659 = vmul.f32 %v703, %v703
    %v1660 = vmul.f32 %v708, %v708
    %v1661 = vmul.f32 %v713, %v713
    %v1662 = vmul.f32 %v718, %v718
    %v1663 = vmul.f32 %v723, %v723
    %v1664 = vmul.f32 %v728, %v728
    %v1665 = vmul.f32 %v733, %v733
    %v1666 = vmul.f32 %v738, %v738
    %v1667 = vmul.f32 %v743, %v743
    %v1668 = vmul.f32 %v748, %v748
    %v1669 = vmul.f32 %v753, %v753
    %v1670 = vmul.f32 %v758, %v758
    %v1671 = vmul.f32 %v763, %v763
    %v1672 = vmul.f32 %v768, %v768
    %v1673 = vmul.f32 %v773, %v773
    %v1674 = vmul.f32 %v778, %v778
    %v1675 = vmul.f32 %v783, %v783
    %v1676 = vmul.f32 %v788, %v788
    %v1677 = vmul.f32 %v793, %v793
    %v1678 = vmul.f32 %v798, %v798
    %v1679 = vmul.f32 %v803, %v803
    %v1680 = vmul.f32 %v808, %v808
    %v1681 = vmul.f32 %v813, %v813
    %v1682 = vmul.f32 %v818, %v818
    %v1683 = vmul.f32 %v823, %v823
    %v1684 = vmul.f32 %v828, %v828
    %v1685 = vmul.f32 %v833, %v833
    %v1686 = vmul.f32 %v838, %v838
    %v1687 = vmul.f32 %v843, %v843
    %v1688 = vmul.f32 %v848, %v848
    %v1689 = vmul.f32 %v853, %v853
    %v1690 = vmul.f32 %v858, %v858
    %v1691 = vmul.f32 %v863, %v863
    %v1692 = vmul.f32 %v868, %v868
    %v1693 = vmul.f32 %v873, %v873
    %v1694 = vmul.f32 %v878, %v878
    %v1695 = vmul.f32 %v883, %v883
    %v1696 = vmul.f32 %v888, %v888
    %v1697 = vmul.f32 %v893, %v893
    %v1698 = vmul.f32 %v898, %v898
    %v1699 = vmul.f32 %v903, %v903
    %v1700 = vmul.f32 %v908, %v908
    %v1701 = vmul.f32 %v913, %v913
    %v1702 = vmul.f32 %v918, %v918
    %v1703 = vmul.f32 %v923, %v923
    %v1704 = vmul.f32 %v928, %v928
    %v1705 = vmul.f32 %v933, %v933
    %v1706 = vmul.f32 %v938, %v938
    %v1707 = vmul.f32 %v943, %v943
    %v1708 = vmul.f32 %v948, %v948
    %v1709 = vmul.f32 %v953, %v953
    %v1710 = vmul.f32 %v958, %v958
    %v1711 = vmul.f32 %v963, %v963
    %v1712 = vmul.f32 %v968, %v968
    %v1713 = vmul.f32 %v973, %v973
    %v1714 = vmul.f32 %v978, %v978
    %v1715 = vmul.f32 %v983, %v983
    %v1716 = vmul.f32 %v988, %v988
    %v1717 = vmul.f32 %v993, %v993
    %v1718 = vmul.f32 %v998, %v998
    %v1719 = vmul.f32 %v1003, %v1003
    %v1720 = vmul.f32 %v1008, %v1008
    %v1721 = vmul.f32 %v1013, %v1013
    %v1722 = vmul.f32 %v1018, %v1018
    %v1723 = vmul.f32 %v1023, %v1023
    %v1724 = vmul.f32 %v1028, %v1028
    %v1725 = vmul.f32 %v1033, %v1033
    %v1726 = vmul.f32 %v1038, %v1038
    %v1727 = vmul.f32 %v1043, %v1043
    %v1728 = vmul.f32 %v1048, %v1048
    %v1729 = vmul.f32 %v1053, %v1053
    %v1730 = vmul.f32 %v1058, %v1058
    %v1731 = vmul.f32 %v1063, %v1063
    %v1732 = vmul.f32 %v1068, %v1068
    %v1733 = vmul.f32 %v1073, %v1073
    %v1734 = vmul.f32 %v1078, %v1078
    %v1735 = vmul.f32 %v1083, %v1083
    %v1736 = vmul.f32 %v1088, %v1088
    %v1737 = vmul.f32 %v1093, %v1093
    %v1738 = vmul.f32 %v1098, %v1098
    %v1739 = vmul.f32 %v1103, %v1103
    %v1740 = vmul.f32 %v1108, %v1108
    %v1741 = vmul.f32 %v1113, %v1113
    %v1742 = vmul.f32 %v1118, %v1118
    %v1743 = vmul.f32 %v1123, %v1123
    %v1744 = vmul.f32 %v1128, %v1128
    %v1745 = vmul.f32 %v1133, %v1133
    %v1746 = vmul.f32 %v1138, %v1138
    %v1747 = vmul.f32 %v1143, %v1143
    %v1748 = vmul.f32 %v1148, %v1148
    %v1749 = vmul.f32 %v1153, %v1153
    %v1750 = vmul.f32 %v1158, %v1158
    %v1751 = vmul.f32 %v1163, %v1163
    %v1752 = vmul.f32 %v1168, %v1168
    %v1753 = vmul.f32 %v1173, %v1173
    %v1754 = vmul.f32 %v1178, %v1178
    %v1755 = vmul.f32 %v1183, %v1183
    %v1756 = vmul.f32 %v1188, %v1188
    %v1757 = vmul.f32 %v1193, %v1193
    %v1758 = vmul.f32 %v1198, %v1198
    %v1759 = vmul.f32 %v1203, %v1203
    %v1760 = vmul.f32 %v1208, %v1208
    %v1761 = vmul.f32 %v1213, %v1213
    %v1762 = vmul.f32 %v1218, %v1218
    %v1763 = vmul.f32 %v1223, %v1223
    %v1764 = vmul.f32 %v1228, %v1228
    %v1765 = vmul.f32 %v1233, %v1233
    %v1766 = vsel %vm1236, %v1638, 0.0
    %v1767 = vsel %vm1236, %v1639, 0.0
    %v1768 = vadd.f32 %v1766, %v1767
    %v1769 = vsel %vm1236, %v1640, 0.0
    %v1770 = vadd.f32 %v1768, %v1769
    %v1771 = vsel %vm1236, %v1641, 0.0
    %v1772 = vadd.f32 %v1770, %v1771
    %v1773 = vsel %vm1236, %v1642, 0.0
    %v1774 = vadd.f32 %v1772, %v1773
    %v1775 = vsel %vm1236, %v1643, 0.0
    %v1776 = vadd.f32 %v1774, %v1775
    %v1777 = vsel %vm1236, %v1644, 0.0
    %v1778 = vadd.f32 %v1776, %v1777
    %v1779 = vsel %vm1236, %v1645, 0.0
    %v1780 = vadd.f32 %v1778, %v1779
    %v1781 = vsel %vm1236, %v1646, 0.0
    %v1782 = vadd.f32 %v1780, %v1781
    %v1783 = vsel %vm1236, %v1647, 0.0
    %v1784 = vadd.f32 %v1782, %v1783
    %v1785 = vsel %vm1236, %v1648, 0.0
    %v1786 = vadd.f32 %v1784, %v1785
    %v1787 = vsel %vm1236, %v1649, 0.0
    %v1788 = vadd.f32 %v1786, %v1787
    %v1789 = vsel %vm1236, %v1650, 0.0
    %v1790 = vadd.f32 %v1788, %v1789
    %v1791 = vsel %vm1236, %v1651, 0.0
    %v1792 = vadd.f32 %v1790, %v1791
    %v1793 = vsel %vm1236, %v1652, 0.0
    %v1794 = vadd.f32 %v1792, %v1793
    %v1795 = vsel %vm1236, %v1653, 0.0
    %v1796 = vadd.f32 %v1794, %v1795
    %v1797 = vsel %vm1236, %v1654, 0.0
    %v1798 = vadd.f32 %v1796, %v1797
    %v1799 = vsel %vm1236, %v1655, 0.0
    %v1800 = vadd.f32 %v1798, %v1799
    %v1801 = vsel %vm1236, %v1656, 0.0
    %v1802 = vadd.f32 %v1800, %v1801
    %v1803 = vsel %vm1236, %v1657, 0.0
    %v1804 = vadd.f32 %v1802, %v1803
    %v1805 = vsel %vm1236, %v1658, 0.0
    %v1806 = vadd.f32 %v1804, %v1805
    %v1807 = vsel %vm1236, %v1659, 0.0
    %v1808 = vadd.f32 %v1806, %v1807
    %v1809 = vsel %vm1236, %v1660, 0.0
    %v1810 = vadd.f32 %v1808, %v1809
    %v1811 = vsel %vm1236, %v1661, 0.0
    %v1812 = vadd.f32 %v1810, %v1811
    %v1813 = vsel %vm1236, %v1662, 0.0
    %v1814 = vadd.f32 %v1812, %v1813
    %v1815 = vsel %vm1236, %v1663, 0.0
    %v1816 = vadd.f32 %v1814, %v1815
    %v1817 = vsel %vm1236, %v1664, 0.0
    %v1818 = vadd.f32 %v1816, %v1817
    %v1819 = vsel %vm1236, %v1665, 0.0
    %v1820 = vadd.f32 %v1818, %v1819
    %v1821 = vsel %vm1236, %v1666, 0.0
    %v1822 = vadd.f32 %v1820, %v1821
    %v1823 = vsel %vm1236, %v1667, 0.0
    %v1824 = vadd.f32 %v1822, %v1823
    %v1825 = vsel %vm1236, %v1668, 0.0
    %v1826 = vadd.f32 %v1824, %v1825
    %v1827 = vsel %vm1236, %v1669, 0.0
    %v1828 = vadd.f32 %v1826, %v1827
    %v1829 = vsel %vm1236, %v1670, 0.0
    %v1830 = vadd.f32 %v1828, %v1829
    %v1831 = vsel %vm1236, %v1671, 0.0
    %v1832 = vadd.f32 %v1830, %v1831
    %v1833 = vsel %vm1236, %v1672, 0.0
    %v1834 = vadd.f32 %v1832, %v1833
    %v1835 = vsel %vm1236, %v1673, 0.0
    %v1836 = vadd.f32 %v1834, %v1835
    %v1837 = vsel %vm1236, %v1674, 0.0
    %v1838 = vadd.f32 %v1836, %v1837
    %v1839 = vsel %vm1236, %v1675, 0.0
    %v1840 = vadd.f32 %v1838, %v1839
    %v1841 = vsel %vm1236, %v1676, 0.0
    %v1842 = vadd.f32 %v1840, %v1841
    %v1843 = vsel %vm1236, %v1677, 0.0
    %v1844 = vadd.f32 %v1842, %v1843
    %v1845 = vsel %vm1236, %v1678, 0.0
    %v1846 = vadd.f32 %v1844, %v1845
    %v1847 = vsel %vm1236, %v1679, 0.0
    %v1848 = vadd.f32 %v1846, %v1847
    %v1849 = vsel %vm1236, %v1680, 0.0
    %v1850 = vadd.f32 %v1848, %v1849
    %v1851 = vsel %vm1236, %v1681, 0.0
    %v1852 = vadd.f32 %v1850, %v1851
    %v1853 = vsel %vm1236, %v1682, 0.0
    %v1854 = vadd.f32 %v1852, %v1853
    %v1855 = vsel %vm1236, %v1683, 0.0
    %v1856 = vadd.f32 %v1854, %v1855
    %v1857 = vsel %vm1236, %v1684, 0.0
    %v1858 = vadd.f32 %v1856, %v1857
    %v1859 = vsel %vm1236, %v1685, 0.0
    %v1860 = vadd.f32 %v1858, %v1859
    %v1861 = vsel %vm1236, %v1686, 0.0
    %v1862 = vadd.f32 %v1860, %v1861
    %v1863 = vsel %vm1236, %v1687, 0.0
    %v1864 = vadd.f32 %v1862, %v1863
    %v1865 = vsel %vm1236, %v1688, 0.0
    %v1866 = vadd.f32 %v1864, %v1865
    %v1867 = vsel %vm1236, %v1689, 0.0
    %v1868 = vadd.f32 %v1866, %v1867
    %v1869 = vsel %vm1236, %v1690, 0.0
    %v1870 = vadd.f32 %v1868, %v1869
    %v1871 = vsel %vm1236, %v1691, 0.0
    %v1872 = vadd.f32 %v1870, %v1871
    %v1873 = vsel %vm1236, %v1692, 0.0
    %v1874 = vadd.f32 %v1872, %v1873
    %v1875 = vsel %vm1236, %v1693, 0.0
    %v1876 = vadd.f32 %v1874, %v1875
    %v1877 = vsel %vm1236, %v1694, 0.0
    %v1878 = vadd.f32 %v1876, %v1877
    %v1879 = vsel %vm1236, %v1695, 0.0
    %v1880 = vadd.f32 %v1878, %v1879
    %v1881 = vsel %vm1236, %v1696, 0.0
    %v1882 = vadd.f32 %v1880, %v1881
    %v1883 = vsel %vm1236, %v1697, 0.0
    %v1884 = vadd.f32 %v1882, %v1883
    %v1885 = vsel %vm1236, %v1698, 0.0
    %v1886 = vadd.f32 %v1884, %v1885
    %v1887 = vsel %vm1236, %v1699, 0.0
    %v1888 = vadd.f32 %v1886, %v1887
    %v1889 = vsel %vm1236, %v1700, 0.0
    %v1890 = vadd.f32 %v1888, %v1889
    %v1891 = vsel %vm1236, %v1701, 0.0
    %v1892 = vadd.f32 %v1890, %v1891
    %v1893 = vsel %vm1236, %v1702, 0.0
    %v1894 = vadd.f32 %v1892, %v1893
    %v1895 = vsel %vm1236, %v1703, 0.0
    %v1896 = vadd.f32 %v1894, %v1895
    %v1897 = vsel %vm1236, %v1704, 0.0
    %v1898 = vadd.f32 %v1896, %v1897
    %v1899 = vsel %vm1236, %v1705, 0.0
    %v1900 = vadd.f32 %v1898, %v1899
    %v1901 = vsel %vm1236, %v1706, 0.0
    %v1902 = vadd.f32 %v1900, %v1901
    %v1903 = vsel %vm1236, %v1707, 0.0
    %v1904 = vadd.f32 %v1902, %v1903
    %v1905 = vsel %vm1236, %v1708, 0.0
    %v1906 = vadd.f32 %v1904, %v1905
    %v1907 = vsel %vm1236, %v1709, 0.0
    %v1908 = vadd.f32 %v1906, %v1907
    %v1909 = vsel %vm1236, %v1710, 0.0
    %v1910 = vadd.f32 %v1908, %v1909
    %v1911 = vsel %vm1236, %v1711, 0.0
    %v1912 = vadd.f32 %v1910, %v1911
    %v1913 = vsel %vm1236, %v1712, 0.0
    %v1914 = vadd.f32 %v1912, %v1913
    %v1915 = vsel %vm1236, %v1713, 0.0
    %v1916 = vadd.f32 %v1914, %v1915
    %v1917 = vsel %vm1236, %v1714, 0.0
    %v1918 = vadd.f32 %v1916, %v1917
    %v1919 = vsel %vm1236, %v1715, 0.0
    %v1920 = vadd.f32 %v1918, %v1919
    %v1921 = vsel %vm1236, %v1716, 0.0
    %v1922 = vadd.f32 %v1920, %v1921
    %v1923 = vsel %vm1236, %v1717, 0.0
    %v1924 = vadd.f32 %v1922, %v1923
    %v1925 = vsel %vm1236, %v1718, 0.0
    %v1926 = vadd.f32 %v1924, %v1925
    %v1927 = vsel %vm1236, %v1719, 0.0
    %v1928 = vadd.f32 %v1926, %v1927
    %v1929 = vsel %vm1236, %v1720, 0.0
    %v1930 = vadd.f32 %v1928, %v1929
    %v1931 = vsel %vm1236, %v1721, 0.0
    %v1932 = vadd.f32 %v1930, %v1931
    %v1933 = vsel %vm1236, %v1722, 0.0
    %v1934 = vadd.f32 %v1932, %v1933
    %v1935 = vsel %vm1236, %v1723, 0.0
    %v1936 = vadd.f32 %v1934, %v1935
    %v1937 = vsel %vm1236, %v1724, 0.0
    %v1938 = vadd.f32 %v1936, %v1937
    %v1939 = vsel %vm1236, %v1725, 0.0
    %v1940 = vadd.f32 %v1938, %v1939
    %v1941 = vsel %vm1236, %v1726, 0.0
    %v1942 = vadd.f32 %v1940, %v1941
    %v1943 = vsel %vm1236, %v1727, 0.0
    %v1944 = vadd.f32 %v1942, %v1943
    %v1945 = vsel %vm1236, %v1728, 0.0
    %v1946 = vadd.f32 %v1944, %v1945
    %v1947 = vsel %vm1236, %v1729, 0.0
    %v1948 = vadd.f32 %v1946, %v1947
    %v1949 = vsel %vm1236, %v1730, 0.0
    %v1950 = vadd.f32 %v1948, %v1949
    %v1951 = vsel %vm1236, %v1731, 0.0
    %v1952 = vadd.f32 %v1950, %v1951
    %v1953 = vsel %vm1236, %v1732, 0.0
    %v1954 = vadd.f32 %v1952, %v1953
    %v1955 = vsel %vm1236, %v1733, 0.0
    %v1956 = vadd.f32 %v1954, %v1955
    %v1957 = vsel %vm1236, %v1734, 0.0
    %v1958 = vadd.f32 %v1956, %v1957
    %v1959 = vsel %vm1236, %v1735, 0.0
    %v1960 = vadd.f32 %v1958, %v1959
    %v1961 = vsel %vm1236, %v1736, 0.0
    %v1962 = vadd.f32 %v1960, %v1961
    %v1963 = vsel %vm1236, %v1737, 0.0
    %v1964 = vadd.f32 %v1962, %v1963
    %v1965 = vsel %vm1236, %v1738, 0.0
    %v1966 = vadd.f32 %v1964, %v1965
    %v1967 = vsel %vm1236, %v1739, 0.0
    %v1968 = vadd.f32 %v1966, %v1967
    %v1969 = vsel %vm1236, %v1740, 0.0
    %v1970 = vadd.f32 %v1968, %v1969
    %v1971 = vsel %vm1236, %v1741, 0.0
    %v1972 = vadd.f32 %v1970, %v1971
    %v1973 = vsel %vm1236, %v1742, 0.0
    %v1974 = vadd.f32 %v1972, %v1973
    %v1975 = vsel %vm1236, %v1743, 0.0
    %v1976 = vadd.f32 %v1974, %v1975
    %v1977 = vsel %vm1236, %v1744, 0.0
    %v1978 = vadd.f32 %v1976, %v1977
    %v1979 = vsel %vm1236, %v1745, 0.0
    %v1980 = vadd.f32 %v1978, %v1979
    %v1981 = vsel %vm1236, %v1746, 0.0
    %v1982 = vadd.f32 %v1980, %v1981
    %v1983 = vsel %vm1236, %v1747, 0.0
    %v1984 = vadd.f32 %v1982, %v1983
    %v1985 = vsel %vm1236, %v1748, 0.0
    %v1986 = vadd.f32 %v1984, %v1985
    %v1987 = vsel %vm1236, %v1749, 0.0
    %v1988 = vadd.f32 %v1986, %v1987
    %v1989 = vsel %vm1236, %v1750, 0.0
    %v1990 = vadd.f32 %v1988, %v1989
    %v1991 = vsel %vm1236, %v1751, 0.0
    %v1992 = vadd.f32 %v1990, %v1991
    %v1993 = vsel %vm1236, %v1752, 0.0
    %v1994 = vadd.f32 %v1992, %v1993
    %v1995 = vsel %vm1236, %v1753, 0.0
    %v1996 = vadd.f32 %v1994, %v1995
    %v1997 = vsel %vm1236, %v1754, 0.0
    %v1998 = vadd.f32 %v1996, %v1997
    %v1999 = vsel %vm1236, %v1755, 0.0
    %v2000 = vadd.f32 %v1998, %v1999
    %v2001 = vsel %vm1236, %v1756, 0.0
    %v2002 = vadd.f32 %v2000, %v2001
    %v2003 = vsel %vm1236, %v1757, 0.0
    %v2004 = vadd.f32 %v2002, %v2003
    %v2005 = vsel %vm1236, %v1758, 0.0
    %v2006 = vadd.f32 %v2004, %v2005
    %v2007 = vsel %vm1236, %v1759, 0.0
    %v2008 = vadd.f32 %v2006, %v2007
    %v2009 = vsel %vm1236, %v1760, 0.0
    %v2010 = vadd.f32 %v2008, %v2009
    %v2011 = vsel %vm1236, %v1761, 0.0
    %v2012 = vadd.f32 %v2010, %v2011
    %v2013 = vsel %vm1236, %v1762, 0.0
    %v2014 = vadd.f32 %v2012, %v2013
    %v2015 = vsel %vm1236, %v1763, 0.0
    %v2016 = vadd.f32 %v2014, %v2015
    %v2017 = vsel %vm1236, %v1764, 0.0
    %v2018 = vadd.f32 %v2016, %v2017
    %v2019 = vsel %vm1236, %v1765, 0.0
    %v2020 = vadd.f32 %v2018, %v2019
    %v2021 = vrot.slane %v2020, 4
    %v2022 = vadd.f32 %v2020, %v2021
    %v2023 = vrot.slane %v2022, 2
    %v2024 = vadd.f32 %v2022, %v2023
    %v2025 = vrot.slane %v2024, 1
    %v2026 = vadd.f32 %v2024, %v2025
    %v2027 = vadd.f32 %v1637, %v2026
    %2028 = vst.msk [vmem:[#allocation4] sm:$0x1] %vm1635, %v2027
    // Predicated region
    $region14: #{tpu_custom_call.1} parent=1 // pred_check
      _
    $region15: #{tpu_custom_call.1} parent=1 // pred_check_branch
      %2030 = sbr.rel (0) target = $region17
    $region16: #{tpu_custom_call.1} parent=1 // pred_region
      _
    $region17: #{tpu_custom_call.1} parent=1 // pred_fallthru
      _
    // Predicated region
    $region18: #{tpu_custom_call.1} parent=1 // pred_check
      _
    $region19: #{tpu_custom_call.1} parent=1 // pred_check_branch
      %2032 = sbr.rel (0) target = $region21
    $region20: #{tpu_custom_call.1} parent=1 // pred_region
      %s2034 = ssub.s32 16, 16
      %2035 = vsyncadd [#allocation3], %s2034
      %s2037 = sshll.u32 [#allocation2], 4
      %s2038 = int_to_ptr.vmem [resolvable:$true] %s2037
      %2040 = dma.vmem_to_hbm [thread:$0]  %s2038, 16, %s3, [#allocation3]
    $region21: #{tpu_custom_call.1} parent=1 // pred_fallthru
      _
    // Predicated region
    $region22: #{tpu_custom_call.1} parent=1 // pred_check
      _
    $region23: #{tpu_custom_call.1} parent=1 // pred_check_branch
      %2042 = sbr.rel (0) target = $region25
    $region24: #{tpu_custom_call.1} parent=1 // pred_region
      %s2044 = ssub.s32 16, 16
      %2045 = vsyncadd [#allocation5], %s2044
      %s2047 = sshll.u32 [#allocation4], 4
      %s2048 = int_to_ptr.vmem [resolvable:$true] %s2047
      %2050 = dma.vmem_to_hbm [thread:$0]  %s2048, 16, %s4, [#allocation5]
    $region25: #{tpu_custom_call.1} parent=1 // pred_fallthru
      _
    // Predicated region
    $region26: #{tpu_custom_call.1} parent=1 // pred_check
      _
    $region27: #{tpu_custom_call.1} parent=1 // pred_check_branch
      %2052 = sbr.rel (0) target = $region29
    $region28: #{tpu_custom_call.1} parent=1 // pred_region
      _
    $region29: #{tpu_custom_call.1} parent=1 // pred_fallthru
      _
    // Predicated region
    $region30: #{tpu_custom_call.1} parent=1 // pred_check
      _
    $region31: #{tpu_custom_call.1} parent=1 // pred_check_branch
      %2054 = sbr.rel (0) target = $region33
    $region32: #{tpu_custom_call.1} parent=1 // pred_region
      %2055 = dma.done [#allocation3], 16
    $region33: #{tpu_custom_call.1} parent=1 // pred_fallthru
      _
    // Predicated region
    $region34: #{tpu_custom_call.1} parent=1 // pred_check
      _
    $region35: #{tpu_custom_call.1} parent=1 // pred_check_branch
      %2057 = sbr.rel (0) target = $region37
    $region36: #{tpu_custom_call.1} parent=1 // pred_region
      %2058 = dma.done [#allocation5], 16
    $region37: #{tpu_custom_call.1} parent=1 // pred_fallthru
      _
    %2059 = vsyncpa [#allocation3], 1
    %2060 = vsyncpa [#allocation5], 1

</llo_original>
